<compile_context>
chip_gen: v7x
topology: tpu7x:2x2x1
jax: 0.10.0
libtpu: 0.0.40
codegen_flags: <defaults>
</compile_context>

<pallas_src>
import functools

import jax
import jax.numpy as jnp
from jax.experimental import pallas as pl
from jax.experimental.pallas import tpu as pltpu


def _encoder_gru_kernel(gi0_ref, wih_ref, bih_ref, whh_ref, bhh_ref,
                        out_ref, state_ref, act_ref, gi_ref,
                        *, seq_len, batch, hidden, num_layers):
    """Fused multi-layer GRU.

    gi0_ref   : (S*B, 3H)  layer-0 input projection (precomputed in XLA)
    wih_ref   : (max(L-1,1), H, 3H)  W_ih^T for layers 1..L-1
    bih_ref   : (max(L-1,1), 1, 3H)
    whh_ref   : (L, H, 3H) W_hh^T
    bhh_ref   : (L, 1, 3H)
    out_ref   : (S*B, H)   last-layer outputs (time-major rows: t*B + b)
    state_ref : (L, B, H)  final hidden state per layer
    act_ref   : VMEM (S*B, H)   inter-layer activations
    gi_ref    : VMEM (S*B, 3H)  hoisted input projection for layers >= 1
    """
    S, B, H = seq_len, batch, hidden

    for layer in range(num_layers):            # static python loop over layers
        last = layer == num_layers - 1

        if layer == 0:
            src_gi = gi0_ref
        else:
            # Hoisted (non-recurrent) input projection for this layer:
            # a single (S*B, H) @ (H, 3H) MXU pass instead of S tiny ones.
            gi_ref[...] = (
                jnp.dot(act_ref[...], wih_ref[layer - 1],
                        preferred_element_type=jnp.float32)
                + bih_ref[layer - 1]
            )
            src_gi = gi_ref

        whh = whh_ref[layer]                   # (H, 3H), stays resident for the loop
        bhh = bhh_ref[layer]                   # (1, 3H)
        dst = out_ref if last else act_ref     # last layer writes output directly

        # Time recurrence: only h_prev @ W_hh^T + gates is on the serial path.
        # S is small and static -> fully unrolled, no per-step grid overhead.
        h = jnp.zeros((B, H), jnp.float32)
        for t in range(S):
            gi_t = src_gi[pl.ds(t * B, B), :]                  # (B, 3H)
            gh = jnp.dot(h, whh, preferred_element_type=jnp.float32) + bhh
            # r and z gates fused into one sigmoid over a (B, 2H) slab.
            rz = jax.nn.sigmoid(gi_t[:, :2 * H] + gh[:, :2 * H])
            r = rz[:, :H]
            z = rz[:, H:2 * H]
            n = jnp.tanh(gi_t[:, 2 * H:] + r * gh[:, 2 * H:])
            h = n + z * (h - n)                                # == (1-z)*n + z*h
            dst[pl.ds(t * B, B), :] = h                        # VMEM store only

        state_ref[layer] = h                                   # final hidden, layer l


def _encoder_gru_pallas(gi0, wih_rest, bih_rest, whh_all, bhh_all,
                        *, seq_len, batch, hidden, num_layers):
    SB = seq_len * batch
    kernel = functools.partial(
        _encoder_gru_kernel,
        seq_len=seq_len, batch=batch, hidden=hidden, num_layers=num_layers)
    out2d, state = pl.pallas_call(
        kernel,
        out_shape=(
            jax.ShapeDtypeStruct((SB, hidden), jnp.float32),
            jax.ShapeDtypeStruct((num_layers, batch, hidden), jnp.float32),
        ),
        scratch_shapes=[
            pltpu.VMEM((SB, hidden), jnp.float32),       # inter-layer activations
            pltpu.VMEM((SB, 3 * hidden), jnp.float32),   # hoisted input projections
        ],
    )(gi0, wih_rest, bih_rest, whh_all, bhh_all)
    return out2d, state


def init_params(key, vocab_size, embed_size, num_hiddens, num_layers):
    """Deterministic synthetic parameters matching nn.Embedding + nn.GRU shapes."""
    keys = jax.random.split(key, 1 + 4 * num_layers)
    params = {"embedding": jax.random.normal(
        keys[0], (vocab_size, embed_size), jnp.float32) * 0.1}
    bound = 1.0 / jnp.sqrt(jnp.float32(num_hiddens))
    layers = []
    for l in range(num_layers):
        in_size = embed_size if l == 0 else num_hiddens
        k0, k1, k2, k3 = keys[1 + 4 * l: 5 + 4 * l]
        # PyTorch stores weight_ih_l{l}: (3H, in), weight_hh_l{l}: (3H, H);
        # keep them pre-transposed so the kernel does x @ W^T directly.
        wih = jax.random.uniform(k0, (3 * num_hiddens, in_size),
                                 jnp.float32, -bound, bound)
        whh = jax.random.uniform(k1, (3 * num_hiddens, num_hiddens),
                                 jnp.float32, -bound, bound)
        bih = jax.random.uniform(k2, (3 * num_hiddens,),
                                 jnp.float32, -bound, bound)
        bhh = jax.random.uniform(k3, (3 * num_hiddens,),
                                 jnp.float32, -bound, bound)
        layers.append({
            "wih_T": wih.T,                 # (in, 3H)
            "whh_T": whh.T,                 # (H, 3H)
            "bih": bih.reshape(1, -1),      # (1, 3H)
            "bhh": bhh.reshape(1, -1),      # (1, 3H)
        })
    params["gru"] = layers
    return params


def seq2seq_encoder_forward(X_tokens, params):
    """X_tokens: (batch, seq) int32.
    Returns (output (seq, batch, hidden), state (num_layers, batch, hidden))."""
    hp = jax.lax.Precision.HIGHEST
    layers = params["gru"]
    L = len(layers)
    H = layers[0]["whh_T"].shape[0]

    emb = params["embedding"]
    X = jnp.take(emb, X_tokens, axis=0)        # (B, S, E)  == nn.Embedding
    X = jnp.transpose(X, (1, 0, 2))            # (S, B, E)  == X.permute(1, 0, 2)
    S, B, E = X.shape

    # Hoisted layer-0 input projection over all (S*B) rows (no serial dependence).
    X2 = X.reshape(S * B, E)
    gi0 = jnp.dot(X2, layers[0]["wih_T"], precision=hp) + layers[0]["bih"]   # (S*B, 3H)

    if L > 1:
        wih_rest = jnp.stack([layers[l]["wih_T"] for l in range(1, L)], axis=0)
        bih_rest = jnp.stack([layers[l]["bih"] for l in range(1, L)], axis=0)
    else:  # dummy (never read in the kernel when L == 1)
        wih_rest = jnp.zeros((1, H, 3 * H), jnp.float32)
        bih_rest = jnp.zeros((1, 1, 3 * H), jnp.float32)
    whh_all = jnp.stack([l["whh_T"] for l in layers], axis=0)
    bhh_all = jnp.stack([l["bhh"] for l in layers], axis=0)

    out2d, state = _encoder_gru_pallas(
        gi0, wih_rest, bih_rest, whh_all, bhh_all,
        seq_len=S, batch=B, hidden=H, num_layers=L)
    output = out2d.reshape(S, B, H)
    return output, state


def _reference_forward(X_tokens, params):
    """Pure-JAX reference (lax.scan GRU) matching PyTorch semantics."""
    hp = jax.lax.Precision.HIGHEST
    X = jnp.take(params["embedding"], X_tokens, axis=0)
    layer_in = jnp.transpose(X, (1, 0, 2))
    states = []
    for layer in params["gru"]:
        wih_T, whh_T = layer["wih_T"], layer["whh_T"]
        bih, bhh = layer["bih"], layer["bhh"]
        H = whh_T.shape[0]
        B = layer_in.shape[1]

        def step(h, x_t, wih_T=wih_T, whh_T=whh_T, bih=bih, bhh=bhh, H=H):
            gi = jnp.dot(x_t, wih_T, precision=hp) + bih
            gh = jnp.dot(h, whh_T, precision=hp) + bhh
            r = jax.nn.sigmoid(gi[:, :H] + gh[:, :H])
            z = jax.nn.sigmoid(gi[:, H:2 * H] + gh[:, H:2 * H])
            n = jnp.tanh(gi[:, 2 * H:] + r * gh[:, 2 * H:])
            h_new = (1.0 - z) * n + z * h
            return h_new, h_new

        h0 = jnp.zeros((B, H), jnp.float32)
        hT, ys = jax.lax.scan(step, h0, layer_in)
        states.append(hT)
        layer_in = ys
    return layer_in, jnp.stack(states, axis=0)


if __name__ == "__main__":
    vocab_size, embed_size, num_hiddens, num_layers = 24, 16, 32, 2
    batch, seq_len = 2, 8

    key = jax.random.PRNGKey(0)
    pkey, xkey = jax.random.split(key)
    params = init_params(pkey, vocab_size, embed_size, num_hiddens, num_layers)
    X_tokens = jax.random.randint(xkey, (batch, seq_len), 0, vocab_size,
                                  dtype=jnp.int32)

    forward = jax.jit(seq2seq_encoder_forward)
    output, state = forward(X_tokens, params)
    jax.block_until_ready((output, state))

    assert output.shape == (seq_len, batch, num_hiddens)
    assert state.shape == (num_layers, batch, num_hiddens)

    ref_out, ref_state = _reference_forward(X_tokens, params)
    assert bool(jnp.allclose(output, ref_out, rtol=2e-3, atol=2e-3)), "output mismatch"
    assert bool(jnp.allclose(state, ref_state, rtol=2e-3, atol=2e-3)), "state mismatch"

    print("KERNEL_OK")
</pallas_src>

<mosaic_0001>
module attributes {stable_mosaic.version = 11 : i64} {
  func.func @_encoder_gru_kernel(%arg0: memref<16x96xf32, #tpu.memory_space<vmem>>, %arg1: memref<1x32x96xf32, #tpu.memory_space<vmem>>, %arg2: memref<1x1x96xf32, #tpu.memory_space<vmem>>, %arg3: memref<2x32x96xf32, #tpu.memory_space<vmem>>, %arg4: memref<2x1x96xf32, #tpu.memory_space<vmem>>, %arg5: memref<16x32xf32, #tpu.memory_space<vmem>>, %arg6: memref<2x2x32xf32, #tpu.memory_space<vmem>>, %arg7: memref<16x32xf32, #tpu.memory_space<vmem>>, %arg8: memref<16x96xf32, #tpu.memory_space<vmem>>) attributes {dimension_semantics = [], scalar_prefetch = 0 : i64, scratch_operands = 2 : i64, tpu.core_type = #tpu.core_type<tc>} {
    %c0 = arith.constant 0 : index
    %c0_0 = arith.constant 0 : index
    %c0_1 = arith.constant 0 : index
    %0 = vector.load %arg3[%c0, %c0_0, %c0_1] : memref<2x32x96xf32, #tpu.memory_space<vmem>>, vector<1x32x96xf32>
    %1 = vector.shape_cast %0 : vector<1x32x96xf32> to vector<32x96xf32>
    %c0_2 = arith.constant 0 : index
    %c0_3 = arith.constant 0 : index
    %c0_4 = arith.constant 0 : index
    %2 = vector.load %arg4[%c0_2, %c0_3, %c0_4] : memref<2x1x96xf32, #tpu.memory_space<vmem>>, vector<1x1x96xf32>
    %3 = vector.shape_cast %2 : vector<1x1x96xf32> to vector<1x96xf32>
    %cst = arith.constant 0.000000e+00 : f32
    %4 = vector.broadcast %cst : f32 to vector<2x32xf32>
    %c0_5 = arith.constant 0 : index
    %c0_6 = arith.constant 0 : index
    %5 = vector.load %arg0[%c0_5, %c0_6] : memref<16x96xf32, #tpu.memory_space<vmem>>, vector<2x96xf32>
    %cst_7 = arith.constant dense<0.000000e+00> : vector<2x96xf32>
    %6 = tpu.matmul %4, %1, %cst_7 {dimension_numbers = #tpu.dot_dimension_numbers<[1], [0], [0], [1], [0, 0, 1, 1], [], []>} : vector<2x32xf32>, vector<32x96xf32>, vector<2x96xf32> -> vector<2x96xf32>
    %7 = vector.broadcast %3 : vector<1x96xf32> to vector<2x96xf32>
    %8 = arith.addf %6, %7 : vector<2x96xf32>
    %9 = vector.extract_strided_slice %5 {offsets = [0, 0], sizes = [2, 64], strides = [1, 1]} : vector<2x96xf32> to vector<2x64xf32>
    %10 = vector.extract_strided_slice %8 {offsets = [0, 0], sizes = [2, 64], strides = [1, 1]} : vector<2x96xf32> to vector<2x64xf32>
    %11 = arith.addf %9, %10 : vector<2x64xf32>
    %12 = arith.negf %11 : vector<2x64xf32>
    %13 = math.exp %12 : vector<2x64xf32>
    %cst_8 = arith.constant 1.000000e+00 : f32
    %14 = vector.broadcast %cst_8 : f32 to vector<2x64xf32>
    %15 = arith.addf %14, %13 : vector<2x64xf32>
    %16 = arith.divf %14, %15 : vector<2x64xf32>
    %17 = vector.extract_strided_slice %16 {offsets = [0, 0], sizes = [2, 32], strides = [1, 1]} : vector<2x64xf32> to vector<2x32xf32>
    %18 = vector.extract_strided_slice %16 {offsets = [0, 32], sizes = [2, 32], strides = [1, 1]} : vector<2x64xf32> to vector<2x32xf32>
    %19 = vector.extract_strided_slice %5 {offsets = [0, 64], sizes = [2, 32], strides = [1, 1]} : vector<2x96xf32> to vector<2x32xf32>
    %20 = vector.extract_strided_slice %8 {offsets = [0, 64], sizes = [2, 32], strides = [1, 1]} : vector<2x96xf32> to vector<2x32xf32>
    %21 = arith.mulf %17, %20 : vector<2x32xf32>
    %22 = arith.addf %19, %21 : vector<2x32xf32>
    %23 = math.tanh %22 : vector<2x32xf32>
    %24 = arith.subf %4, %23 : vector<2x32xf32>
    %25 = arith.mulf %18, %24 : vector<2x32xf32>
    %26 = arith.addf %23, %25 : vector<2x32xf32>
    %c0_9 = arith.constant 0 : index
    %c0_10 = arith.constant 0 : index
    %27 = vector.load %arg7[%c0_9, %c0_10] : memref<16x32xf32, #tpu.memory_space<vmem>>, vector<2x32xf32>
    tpu.vector_store %arg7[%c0_9, %c0_10], %26 {strides = array<i32>} : memref<16x32xf32, #tpu.memory_space<vmem>>, vector<2x32xf32>,
    %c2 = arith.constant 2 : index
    %c0_11 = arith.constant 0 : index
    %28 = vector.load %arg0[%c2, %c0_11] : memref<16x96xf32, #tpu.memory_space<vmem>>, vector<2x96xf32>
    %cst_12 = arith.constant dense<0.000000e+00> : vector<2x96xf32>
    %29 = tpu.matmul %26, %1, %cst_12 {dimension_numbers = #tpu.dot_dimension_numbers<[1], [0], [0], [1], [0, 0, 1, 1], [], []>} : vector<2x32xf32>, vector<32x96xf32>, vector<2x96xf32> -> vector<2x96xf32>
    %30 = vector.broadcast %3 : vector<1x96xf32> to vector<2x96xf32>
    %31 = arith.addf %29, %30 : vector<2x96xf32>
    %32 = vector.extract_strided_slice %28 {offsets = [0, 0], sizes = [2, 64], strides = [1, 1]} : vector<2x96xf32> to vector<2x64xf32>
    %33 = vector.extract_strided_slice %31 {offsets = [0, 0], sizes = [2, 64], strides = [1, 1]} : vector<2x96xf32> to vector<2x64xf32>
    %34 = arith.addf %32, %33 : vector<2x64xf32>
    %35 = arith.negf %34 : vector<2x64xf32>
    %36 = math.exp %35 : vector<2x64xf32>
    %cst_13 = arith.constant 1.000000e+00 : f32
    %37 = vector.broadcast %cst_13 : f32 to vector<2x64xf32>
    %38 = arith.addf %37, %36 : vector<2x64xf32>
    %39 = arith.divf %37, %38 : vector<2x64xf32>
    %40 = vector.extract_strided_slice %39 {offsets = [0, 0], sizes = [2, 32], strides = [1, 1]} : vector<2x64xf32> to vector<2x32xf32>
    %41 = vector.extract_strided_slice %39 {offsets = [0, 32], sizes = [2, 32], strides = [1, 1]} : vector<2x64xf32> to vector<2x32xf32>
    %42 = vector.extract_strided_slice %28 {offsets = [0, 64], sizes = [2, 32], strides = [1, 1]} : vector<2x96xf32> to vector<2x32xf32>
    %43 = vector.extract_strided_slice %31 {offsets = [0, 64], sizes = [2, 32], strides = [1, 1]} : vector<2x96xf32> to vector<2x32xf32>
    %44 = arith.mulf %40, %43 : vector<2x32xf32>
    %45 = arith.addf %42, %44 : vector<2x32xf32>
    %46 = math.tanh %45 : vector<2x32xf32>
    %47 = arith.subf %26, %46 : vector<2x32xf32>
    %48 = arith.mulf %41, %47 : vector<2x32xf32>
    %49 = arith.addf %46, %48 : vector<2x32xf32>
    %c2_14 = arith.constant 2 : index
    %c0_15 = arith.constant 0 : index
    %50 = vector.load %arg7[%c2_14, %c0_15] : memref<16x32xf32, #tpu.memory_space<vmem>>, vector<2x32xf32>
    tpu.vector_store %arg7[%c2_14, %c0_15], %49 {strides = array<i32>} : memref<16x32xf32, #tpu.memory_space<vmem>>, vector<2x32xf32>,
    %c4 = arith.constant 4 : index
    %c0_16 = arith.constant 0 : index
    %51 = vector.load %arg0[%c4, %c0_16] : memref<16x96xf32, #tpu.memory_space<vmem>>, vector<2x96xf32>
    %cst_17 = arith.constant dense<0.000000e+00> : vector<2x96xf32>
    %52 = tpu.matmul %49, %1, %cst_17 {dimension_numbers = #tpu.dot_dimension_numbers<[1], [0], [0], [1], [0, 0, 1, 1], [], []>} : vector<2x32xf32>, vector<32x96xf32>, vector<2x96xf32> -> vector<2x96xf32>
    %53 = vector.broadcast %3 : vector<1x96xf32> to vector<2x96xf32>
    %54 = arith.addf %52, %53 : vector<2x96xf32>
    %55 = vector.extract_strided_slice %51 {offsets = [0, 0], sizes = [2, 64], strides = [1, 1]} : vector<2x96xf32> to vector<2x64xf32>
    %56 = vector.extract_strided_slice %54 {offsets = [0, 0], sizes = [2, 64], strides = [1, 1]} : vector<2x96xf32> to vector<2x64xf32>
    %57 = arith.addf %55, %56 : vector<2x64xf32>
    %58 = arith.negf %57 : vector<2x64xf32>
    %59 = math.exp %58 : vector<2x64xf32>
    %cst_18 = arith.constant 1.000000e+00 : f32
    %60 = vector.broadcast %cst_18 : f32 to vector<2x64xf32>
    %61 = arith.addf %60, %59 : vector<2x64xf32>
    %62 = arith.divf %60, %61 : vector<2x64xf32>
    %63 = vector.extract_strided_slice %62 {offsets = [0, 0], sizes = [2, 32], strides = [1, 1]} : vector<2x64xf32> to vector<2x32xf32>
    %64 = vector.extract_strided_slice %62 {offsets = [0, 32], sizes = [2, 32], strides = [1, 1]} : vector<2x64xf32> to vector<2x32xf32>
    %65 = vector.extract_strided_slice %51 {offsets = [0, 64], sizes = [2, 32], strides = [1, 1]} : vector<2x96xf32> to vector<2x32xf32>
    %66 = vector.extract_strided_slice %54 {offsets = [0, 64], sizes = [2, 32], strides = [1, 1]} : vector<2x96xf32> to vector<2x32xf32>
    %67 = arith.mulf %63, %66 : vector<2x32xf32>
    %68 = arith.addf %65, %67 : vector<2x32xf32>
    %69 = math.tanh %68 : vector<2x32xf32>
    %70 = arith.subf %49, %69 : vector<2x32xf32>
    %71 = arith.mulf %64, %70 : vector<2x32xf32>
    %72 = arith.addf %69, %71 : vector<2x32xf32>
    %c4_19 = arith.constant 4 : index
    %c0_20 = arith.constant 0 : index
    %73 = vector.load %arg7[%c4_19, %c0_20] : memref<16x32xf32, #tpu.memory_space<vmem>>, vector<2x32xf32>
    tpu.vector_store %arg7[%c4_19, %c0_20], %72 {strides = array<i32>} : memref<16x32xf32, #tpu.memory_space<vmem>>, vector<2x32xf32>,
    %c6 = arith.constant 6 : index
    %c0_21 = arith.constant 0 : index
    %74 = vector.load %arg0[%c6, %c0_21] : memref<16x96xf32, #tpu.memory_space<vmem>>, vector<2x96xf32>
    %cst_22 = arith.constant dense<0.000000e+00> : vector<2x96xf32>
    %75 = tpu.matmul %72, %1, %cst_22 {dimension_numbers = #tpu.dot_dimension_numbers<[1], [0], [0], [1], [0, 0, 1, 1], [], []>} : vector<2x32xf32>, vector<32x96xf32>, vector<2x96xf32> -> vector<2x96xf32>
    %76 = vector.broadcast %3 : vector<1x96xf32> to vector<2x96xf32>
    %77 = arith.addf %75, %76 : vector<2x96xf32>
    %78 = vector.extract_strided_slice %74 {offsets = [0, 0], sizes = [2, 64], strides = [1, 1]} : vector<2x96xf32> to vector<2x64xf32>
    %79 = vector.extract_strided_slice %77 {offsets = [0, 0], sizes = [2, 64], strides = [1, 1]} : vector<2x96xf32> to vector<2x64xf32>
    %80 = arith.addf %78, %79 : vector<2x64xf32>
    %81 = arith.negf %80 : vector<2x64xf32>
    %82 = math.exp %81 : vector<2x64xf32>
    %cst_23 = arith.constant 1.000000e+00 : f32
    %83 = vector.broadcast %cst_23 : f32 to vector<2x64xf32>
    %84 = arith.addf %83, %82 : vector<2x64xf32>
    %85 = arith.divf %83, %84 : vector<2x64xf32>
    %86 = vector.extract_strided_slice %85 {offsets = [0, 0], sizes = [2, 32], strides = [1, 1]} : vector<2x64xf32> to vector<2x32xf32>
    %87 = vector.extract_strided_slice %85 {offsets = [0, 32], sizes = [2, 32], strides = [1, 1]} : vector<2x64xf32> to vector<2x32xf32>
    %88 = vector.extract_strided_slice %74 {offsets = [0, 64], sizes = [2, 32], strides = [1, 1]} : vector<2x96xf32> to vector<2x32xf32>
    %89 = vector.extract_strided_slice %77 {offsets = [0, 64], sizes = [2, 32], strides = [1, 1]} : vector<2x96xf32> to vector<2x32xf32>
    %90 = arith.mulf %86, %89 : vector<2x32xf32>
    %91 = arith.addf %88, %90 : vector<2x32xf32>
    %92 = math.tanh %91 : vector<2x32xf32>
    %93 = arith.subf %72, %92 : vector<2x32xf32>
    %94 = arith.mulf %87, %93 : vector<2x32xf32>
    %95 = arith.addf %92, %94 : vector<2x32xf32>
    %c6_24 = arith.constant 6 : index
    %c0_25 = arith.constant 0 : index
    %96 = vector.load %arg7[%c6_24, %c0_25] : memref<16x32xf32, #tpu.memory_space<vmem>>, vector<2x32xf32>
    tpu.vector_store %arg7[%c6_24, %c0_25], %95 {strides = array<i32>} : memref<16x32xf32, #tpu.memory_space<vmem>>, vector<2x32xf32>,
    %c8 = arith.constant 8 : index
    %c0_26 = arith.constant 0 : index
    %97 = vector.load %arg0[%c8, %c0_26] : memref<16x96xf32, #tpu.memory_space<vmem>>, vector<2x96xf32>
    %cst_27 = arith.constant dense<0.000000e+00> : vector<2x96xf32>
    %98 = tpu.matmul %95, %1, %cst_27 {dimension_numbers = #tpu.dot_dimension_numbers<[1], [0], [0], [1], [0, 0, 1, 1], [], []>} : vector<2x32xf32>, vector<32x96xf32>, vector<2x96xf32> -> vector<2x96xf32>
    %99 = vector.broadcast %3 : vector<1x96xf32> to vector<2x96xf32>
    %100 = arith.addf %98, %99 : vector<2x96xf32>
    %101 = vector.extract_strided_slice %97 {offsets = [0, 0], sizes = [2, 64], strides = [1, 1]} : vector<2x96xf32> to vector<2x64xf32>
    %102 = vector.extract_strided_slice %100 {offsets = [0, 0], sizes = [2, 64], strides = [1, 1]} : vector<2x96xf32> to vector<2x64xf32>
    %103 = arith.addf %101, %102 : vector<2x64xf32>
    %104 = arith.negf %103 : vector<2x64xf32>
    %105 = math.exp %104 : vector<2x64xf32>
    %cst_28 = arith.constant 1.000000e+00 : f32
    %106 = vector.broadcast %cst_28 : f32 to vector<2x64xf32>
    %107 = arith.addf %106, %105 : vector<2x64xf32>
    %108 = arith.divf %106, %107 : vector<2x64xf32>
    %109 = vector.extract_strided_slice %108 {offsets = [0, 0], sizes = [2, 32], strides = [1, 1]} : vector<2x64xf32> to vector<2x32xf32>
    %110 = vector.extract_strided_slice %108 {offsets = [0, 32], sizes = [2, 32], strides = [1, 1]} : vector<2x64xf32> to vector<2x32xf32>
    %111 = vector.extract_strided_slice %97 {offsets = [0, 64], sizes = [2, 32], strides = [1, 1]} : vector<2x96xf32> to vector<2x32xf32>
    %112 = vector.extract_strided_slice %100 {offsets = [0, 64], sizes = [2, 32], strides = [1, 1]} : vector<2x96xf32> to vector<2x32xf32>
    %113 = arith.mulf %109, %112 : vector<2x32xf32>
    %114 = arith.addf %111, %113 : vector<2x32xf32>
    %115 = math.tanh %114 : vector<2x32xf32>
    %116 = arith.subf %95, %115 : vector<2x32xf32>
    %117 = arith.mulf %110, %116 : vector<2x32xf32>
    %118 = arith.addf %115, %117 : vector<2x32xf32>
    %c8_29 = arith.constant 8 : index
    %c0_30 = arith.constant 0 : index
    %119 = vector.load %arg7[%c8_29, %c0_30] : memref<16x32xf32, #tpu.memory_space<vmem>>, vector<2x32xf32>
    tpu.vector_store %arg7[%c8_29, %c0_30], %118 {strides = array<i32>} : memref<16x32xf32, #tpu.memory_space<vmem>>, vector<2x32xf32>,
    %c10 = arith.constant 10 : index
    %c0_31 = arith.constant 0 : index
    %120 = vector.load %arg0[%c10, %c0_31] : memref<16x96xf32, #tpu.memory_space<vmem>>, vector<2x96xf32>
    %cst_32 = arith.constant dense<0.000000e+00> : vector<2x96xf32>
    %121 = tpu.matmul %118, %1, %cst_32 {dimension_numbers = #tpu.dot_dimension_numbers<[1], [0], [0], [1], [0, 0, 1, 1], [], []>} : vector<2x32xf32>, vector<32x96xf32>, vector<2x96xf32> -> vector<2x96xf32>
    %122 = vector.broadcast %3 : vector<1x96xf32> to vector<2x96xf32>
    %123 = arith.addf %121, %122 : vector<2x96xf32>
    %124 = vector.extract_strided_slice %120 {offsets = [0, 0], sizes = [2, 64], strides = [1, 1]} : vector<2x96xf32> to vector<2x64xf32>
    %125 = vector.extract_strided_slice %123 {offsets = [0, 0], sizes = [2, 64], strides = [1, 1]} : vector<2x96xf32> to vector<2x64xf32>
    %126 = arith.addf %124, %125 : vector<2x64xf32>
    %127 = arith.negf %126 : vector<2x64xf32>
    %128 = math.exp %127 : vector<2x64xf32>
    %cst_33 = arith.constant 1.000000e+00 : f32
    %129 = vector.broadcast %cst_33 : f32 to vector<2x64xf32>
    %130 = arith.addf %129, %128 : vector<2x64xf32>
    %131 = arith.divf %129, %130 : vector<2x64xf32>
    %132 = vector.extract_strided_slice %131 {offsets = [0, 0], sizes = [2, 32], strides = [1, 1]} : vector<2x64xf32> to vector<2x32xf32>
    %133 = vector.extract_strided_slice %131 {offsets = [0, 32], sizes = [2, 32], strides = [1, 1]} : vector<2x64xf32> to vector<2x32xf32>
    %134 = vector.extract_strided_slice %120 {offsets = [0, 64], sizes = [2, 32], strides = [1, 1]} : vector<2x96xf32> to vector<2x32xf32>
    %135 = vector.extract_strided_slice %123 {offsets = [0, 64], sizes = [2, 32], strides = [1, 1]} : vector<2x96xf32> to vector<2x32xf32>
    %136 = arith.mulf %132, %135 : vector<2x32xf32>
    %137 = arith.addf %134, %136 : vector<2x32xf32>
    %138 = math.tanh %137 : vector<2x32xf32>
    %139 = arith.subf %118, %138 : vector<2x32xf32>
    %140 = arith.mulf %133, %139 : vector<2x32xf32>
    %141 = arith.addf %138, %140 : vector<2x32xf32>
    %c10_34 = arith.constant 10 : index
    %c0_35 = arith.constant 0 : index
    %142 = vector.load %arg7[%c10_34, %c0_35] : memref<16x32xf32, #tpu.memory_space<vmem>>, vector<2x32xf32>
    tpu.vector_store %arg7[%c10_34, %c0_35], %141 {strides = array<i32>} : memref<16x32xf32, #tpu.memory_space<vmem>>, vector<2x32xf32>,
    %c12 = arith.constant 12 : index
    %c0_36 = arith.constant 0 : index
    %143 = vector.load %arg0[%c12, %c0_36] : memref<16x96xf32, #tpu.memory_space<vmem>>, vector<2x96xf32>
    %cst_37 = arith.constant dense<0.000000e+00> : vector<2x96xf32>
    %144 = tpu.matmul %141, %1, %cst_37 {dimension_numbers = #tpu.dot_dimension_numbers<[1], [0], [0], [1], [0, 0, 1, 1], [], []>} : vector<2x32xf32>, vector<32x96xf32>, vector<2x96xf32> -> vector<2x96xf32>
    %145 = vector.broadcast %3 : vector<1x96xf32> to vector<2x96xf32>
    %146 = arith.addf %144, %145 : vector<2x96xf32>
    %147 = vector.extract_strided_slice %143 {offsets = [0, 0], sizes = [2, 64], strides = [1, 1]} : vector<2x96xf32> to vector<2x64xf32>
    %148 = vector.extract_strided_slice %146 {offsets = [0, 0], sizes = [2, 64], strides = [1, 1]} : vector<2x96xf32> to vector<2x64xf32>
    %149 = arith.addf %147, %148 : vector<2x64xf32>
    %150 = arith.negf %149 : vector<2x64xf32>
    %151 = math.exp %150 : vector<2x64xf32>
    %cst_38 = arith.constant 1.000000e+00 : f32
    %152 = vector.broadcast %cst_38 : f32 to vector<2x64xf32>
    %153 = arith.addf %152, %151 : vector<2x64xf32>
    %154 = arith.divf %152, %153 : vector<2x64xf32>
    %155 = vector.extract_strided_slice %154 {offsets = [0, 0], sizes = [2, 32], strides = [1, 1]} : vector<2x64xf32> to vector<2x32xf32>
    %156 = vector.extract_strided_slice %154 {offsets = [0, 32], sizes = [2, 32], strides = [1, 1]} : vector<2x64xf32> to vector<2x32xf32>
    %157 = vector.extract_strided_slice %143 {offsets = [0, 64], sizes = [2, 32], strides = [1, 1]} : vector<2x96xf32> to vector<2x32xf32>
    %158 = vector.extract_strided_slice %146 {offsets = [0, 64], sizes = [2, 32], strides = [1, 1]} : vector<2x96xf32> to vector<2x32xf32>
    %159 = arith.mulf %155, %158 : vector<2x32xf32>
    %160 = arith.addf %157, %159 : vector<2x32xf32>
    %161 = math.tanh %160 : vector<2x32xf32>
    %162 = arith.subf %141, %161 : vector<2x32xf32>
    %163 = arith.mulf %156, %162 : vector<2x32xf32>
    %164 = arith.addf %161, %163 : vector<2x32xf32>
    %c12_39 = arith.constant 12 : index
    %c0_40 = arith.constant 0 : index
    %165 = vector.load %arg7[%c12_39, %c0_40] : memref<16x32xf32, #tpu.memory_space<vmem>>, vector<2x32xf32>
    tpu.vector_store %arg7[%c12_39, %c0_40], %164 {strides = array<i32>} : memref<16x32xf32, #tpu.memory_space<vmem>>, vector<2x32xf32>,
    %c14 = arith.constant 14 : index
    %c0_41 = arith.constant 0 : index
    %166 = vector.load %arg0[%c14, %c0_41] : memref<16x96xf32, #tpu.memory_space<vmem>>, vector<2x96xf32>
    %cst_42 = arith.constant dense<0.000000e+00> : vector<2x96xf32>
    %167 = tpu.matmul %164, %1, %cst_42 {dimension_numbers = #tpu.dot_dimension_numbers<[1], [0], [0], [1], [0, 0, 1, 1], [], []>} : vector<2x32xf32>, vector<32x96xf32>, vector<2x96xf32> -> vector<2x96xf32>
    %168 = vector.broadcast %3 : vector<1x96xf32> to vector<2x96xf32>
    %169 = arith.addf %167, %168 : vector<2x96xf32>
    %170 = vector.extract_strided_slice %166 {offsets = [0, 0], sizes = [2, 64], strides = [1, 1]} : vector<2x96xf32> to vector<2x64xf32>
    %171 = vector.extract_strided_slice %169 {offsets = [0, 0], sizes = [2, 64], strides = [1, 1]} : vector<2x96xf32> to vector<2x64xf32>
    %172 = arith.addf %170, %171 : vector<2x64xf32>
    %173 = arith.negf %172 : vector<2x64xf32>
    %174 = math.exp %173 : vector<2x64xf32>
    %cst_43 = arith.constant 1.000000e+00 : f32
    %175 = vector.broadcast %cst_43 : f32 to vector<2x64xf32>
    %176 = arith.addf %175, %174 : vector<2x64xf32>
    %177 = arith.divf %175, %176 : vector<2x64xf32>
    %178 = vector.extract_strided_slice %177 {offsets = [0, 0], sizes = [2, 32], strides = [1, 1]} : vector<2x64xf32> to vector<2x32xf32>
    %179 = vector.extract_strided_slice %177 {offsets = [0, 32], sizes = [2, 32], strides = [1, 1]} : vector<2x64xf32> to vector<2x32xf32>
    %180 = vector.extract_strided_slice %166 {offsets = [0, 64], sizes = [2, 32], strides = [1, 1]} : vector<2x96xf32> to vector<2x32xf32>
    %181 = vector.extract_strided_slice %169 {offsets = [0, 64], sizes = [2, 32], strides = [1, 1]} : vector<2x96xf32> to vector<2x32xf32>
    %182 = arith.mulf %178, %181 : vector<2x32xf32>
    %183 = arith.addf %180, %182 : vector<2x32xf32>
    %184 = math.tanh %183 : vector<2x32xf32>
    %185 = arith.subf %164, %184 : vector<2x32xf32>
    %186 = arith.mulf %179, %185 : vector<2x32xf32>
    %187 = arith.addf %184, %186 : vector<2x32xf32>
    %c14_44 = arith.constant 14 : index
    %c0_45 = arith.constant 0 : index
    %188 = vector.load %arg7[%c14_44, %c0_45] : memref<16x32xf32, #tpu.memory_space<vmem>>, vector<2x32xf32>
    tpu.vector_store %arg7[%c14_44, %c0_45], %187 {strides = array<i32>} : memref<16x32xf32, #tpu.memory_space<vmem>>, vector<2x32xf32>,
    %c0_46 = arith.constant 0 : index
    %c0_47 = arith.constant 0 : index
    %c0_48 = arith.constant 0 : index
    %189 = vector.load %arg6[%c0_46, %c0_47, %c0_48] : memref<2x2x32xf32, #tpu.memory_space<vmem>>, vector<1x2x32xf32>
    %190 = vector.shape_cast %189 : vector<1x2x32xf32> to vector<2x32xf32>
    %191 = vector.shape_cast %187 : vector<2x32xf32> to vector<1x2x32xf32>
    tpu.vector_store %arg6[%c0_46, %c0_47, %c0_48], %191 {strides = array<i32>} : memref<2x2x32xf32, #tpu.memory_space<vmem>>, vector<1x2x32xf32>,
    %c0_49 = arith.constant 0 : index
    %c0_50 = arith.constant 0 : index
    %192 = vector.load %arg7[%c0_49, %c0_50] : memref<16x32xf32, #tpu.memory_space<vmem>>, vector<16x32xf32>
    %c0_51 = arith.constant 0 : index
    %c0_52 = arith.constant 0 : index
    %c0_53 = arith.constant 0 : index
    %193 = vector.load %arg1[%c0_51, %c0_52, %c0_53] : memref<1x32x96xf32, #tpu.memory_space<vmem>>, vector<1x32x96xf32>
    %194 = vector.shape_cast %193 : vector<1x32x96xf32> to vector<32x96xf32>
    %cst_54 = arith.constant dense<0.000000e+00> : vector<16x96xf32>
    %195 = tpu.matmul %192, %194, %cst_54 {dimension_numbers = #tpu.dot_dimension_numbers<[1], [0], [0], [1], [0, 0, 1, 1], [], []>} : vector<16x32xf32>, vector<32x96xf32>, vector<16x96xf32> -> vector<16x96xf32>
    %c0_55 = arith.constant 0 : index
    %c0_56 = arith.constant 0 : index
    %c0_57 = arith.constant 0 : index
    %196 = vector.load %arg2[%c0_55, %c0_56, %c0_57] : memref<1x1x96xf32, #tpu.memory_space<vmem>>, vector<1x1x96xf32>
    %197 = vector.shape_cast %196 : vector<1x1x96xf32> to vector<1x96xf32>
    %198 = vector.broadcast %197 : vector<1x96xf32> to vector<16x96xf32>
    %199 = arith.addf %195, %198 : vector<16x96xf32>
    %c0_58 = arith.constant 0 : index
    %c0_59 = arith.constant 0 : index
    %200 = vector.load %arg8[%c0_58, %c0_59] : memref<16x96xf32, #tpu.memory_space<vmem>>, vector<16x96xf32>
    tpu.vector_store %arg8[%c0_58, %c0_59], %199 {strides = array<i32>} : memref<16x96xf32, #tpu.memory_space<vmem>>, vector<16x96xf32>,
    %c1 = arith.constant 1 : index
    %c0_60 = arith.constant 0 : index
    %c0_61 = arith.constant 0 : index
    %201 = vector.load %arg3[%c1, %c0_60, %c0_61] : memref<2x32x96xf32, #tpu.memory_space<vmem>>, vector<1x32x96xf32>
    %202 = vector.shape_cast %201 : vector<1x32x96xf32> to vector<32x96xf32>
    %c1_62 = arith.constant 1 : index
    %c0_63 = arith.constant 0 : index
    %c0_64 = arith.constant 0 : index
    %203 = vector.load %arg4[%c1_62, %c0_63, %c0_64] : memref<2x1x96xf32, #tpu.memory_space<vmem>>, vector<1x1x96xf32>
    %204 = vector.shape_cast %203 : vector<1x1x96xf32> to vector<1x96xf32>
    %cst_65 = arith.constant 0.000000e+00 : f32
    %205 = vector.broadcast %cst_65 : f32 to vector<2x32xf32>
    %c0_66 = arith.constant 0 : index
    %c0_67 = arith.constant 0 : index
    %206 = vector.load %arg8[%c0_66, %c0_67] : memref<16x96xf32, #tpu.memory_space<vmem>>, vector<2x96xf32>
    %cst_68 = arith.constant dense<0.000000e+00> : vector<2x96xf32>
    %207 = tpu.matmul %205, %202, %cst_68 {dimension_numbers = #tpu.dot_dimension_numbers<[1], [0], [0], [1], [0, 0, 1, 1], [], []>} : vector<2x32xf32>, vector<32x96xf32>, vector<2x96xf32> -> vector<2x96xf32>
    %208 = vector.broadcast %204 : vector<1x96xf32> to vector<2x96xf32>
    %209 = arith.addf %207, %208 : vector<2x96xf32>
    %210 = vector.extract_strided_slice %206 {offsets = [0, 0], sizes = [2, 64], strides = [1, 1]} : vector<2x96xf32> to vector<2x64xf32>
    %211 = vector.extract_strided_slice %209 {offsets = [0, 0], sizes = [2, 64], strides = [1, 1]} : vector<2x96xf32> to vector<2x64xf32>
    %212 = arith.addf %210, %211 : vector<2x64xf32>
    %213 = arith.negf %212 : vector<2x64xf32>
    %214 = math.exp %213 : vector<2x64xf32>
    %cst_69 = arith.constant 1.000000e+00 : f32
    %215 = vector.broadcast %cst_69 : f32 to vector<2x64xf32>
    %216 = arith.addf %215, %214 : vector<2x64xf32>
    %217 = arith.divf %215, %216 : vector<2x64xf32>
    %218 = vector.extract_strided_slice %217 {offsets = [0, 0], sizes = [2, 32], strides = [1, 1]} : vector<2x64xf32> to vector<2x32xf32>
    %219 = vector.extract_strided_slice %217 {offsets = [0, 32], sizes = [2, 32], strides = [1, 1]} : vector<2x64xf32> to vector<2x32xf32>
    %220 = vector.extract_strided_slice %206 {offsets = [0, 64], sizes = [2, 32], strides = [1, 1]} : vector<2x96xf32> to vector<2x32xf32>
    %221 = vector.extract_strided_slice %209 {offsets = [0, 64], sizes = [2, 32], strides = [1, 1]} : vector<2x96xf32> to vector<2x32xf32>
    %222 = arith.mulf %218, %221 : vector<2x32xf32>
    %223 = arith.addf %220, %222 : vector<2x32xf32>
    %224 = math.tanh %223 : vector<2x32xf32>
    %225 = arith.subf %205, %224 : vector<2x32xf32>
    %226 = arith.mulf %219, %225 : vector<2x32xf32>
    %227 = arith.addf %224, %226 : vector<2x32xf32>
    %c0_70 = arith.constant 0 : index
    %c0_71 = arith.constant 0 : index
    %228 = vector.load %arg5[%c0_70, %c0_71] : memref<16x32xf32, #tpu.memory_space<vmem>>, vector<2x32xf32>
    tpu.vector_store %arg5[%c0_70, %c0_71], %227 {strides = array<i32>} : memref<16x32xf32, #tpu.memory_space<vmem>>, vector<2x32xf32>,
    %c2_72 = arith.constant 2 : index
    %c0_73 = arith.constant 0 : index
    %229 = vector.load %arg8[%c2_72, %c0_73] : memref<16x96xf32, #tpu.memory_space<vmem>>, vector<2x96xf32>
    %cst_74 = arith.constant dense<0.000000e+00> : vector<2x96xf32>
    %230 = tpu.matmul %227, %202, %cst_74 {dimension_numbers = #tpu.dot_dimension_numbers<[1], [0], [0], [1], [0, 0, 1, 1], [], []>} : vector<2x32xf32>, vector<32x96xf32>, vector<2x96xf32> -> vector<2x96xf32>
    %231 = vector.broadcast %204 : vector<1x96xf32> to vector<2x96xf32>
    %232 = arith.addf %230, %231 : vector<2x96xf32>
    %233 = vector.extract_strided_slice %229 {offsets = [0, 0], sizes = [2, 64], strides = [1, 1]} : vector<2x96xf32> to vector<2x64xf32>
    %234 = vector.extract_strided_slice %232 {offsets = [0, 0], sizes = [2, 64], strides = [1, 1]} : vector<2x96xf32> to vector<2x64xf32>
    %235 = arith.addf %233, %234 : vector<2x64xf32>
    %236 = arith.negf %235 : vector<2x64xf32>
    %237 = math.exp %236 : vector<2x64xf32>
    %cst_75 = arith.constant 1.000000e+00 : f32
    %238 = vector.broadcast %cst_75 : f32 to vector<2x64xf32>
    %239 = arith.addf %238, %237 : vector<2x64xf32>
    %240 = arith.divf %238, %239 : vector<2x64xf32>
    %241 = vector.extract_strided_slice %240 {offsets = [0, 0], sizes = [2, 32], strides = [1, 1]} : vector<2x64xf32> to vector<2x32xf32>
    %242 = vector.extract_strided_slice %240 {offsets = [0, 32], sizes = [2, 32], strides = [1, 1]} : vector<2x64xf32> to vector<2x32xf32>
    %243 = vector.extract_strided_slice %229 {offsets = [0, 64], sizes = [2, 32], strides = [1, 1]} : vector<2x96xf32> to vector<2x32xf32>
    %244 = vector.extract_strided_slice %232 {offsets = [0, 64], sizes = [2, 32], strides = [1, 1]} : vector<2x96xf32> to vector<2x32xf32>
    %245 = arith.mulf %241, %244 : vector<2x32xf32>
    %246 = arith.addf %243, %245 : vector<2x32xf32>
    %247 = math.tanh %246 : vector<2x32xf32>
    %248 = arith.subf %227, %247 : vector<2x32xf32>
    %249 = arith.mulf %242, %248 : vector<2x32xf32>
    %250 = arith.addf %247, %249 : vector<2x32xf32>
    %c2_76 = arith.constant 2 : index
    %c0_77 = arith.constant 0 : index
    %251 = vector.load %arg5[%c2_76, %c0_77] : memref<16x32xf32, #tpu.memory_space<vmem>>, vector<2x32xf32>
    tpu.vector_store %arg5[%c2_76, %c0_77], %250 {strides = array<i32>} : memref<16x32xf32, #tpu.memory_space<vmem>>, vector<2x32xf32>,
    %c4_78 = arith.constant 4 : index
    %c0_79 = arith.constant 0 : index
    %252 = vector.load %arg8[%c4_78, %c0_79] : memref<16x96xf32, #tpu.memory_space<vmem>>, vector<2x96xf32>
    %cst_80 = arith.constant dense<0.000000e+00> : vector<2x96xf32>
    %253 = tpu.matmul %250, %202, %cst_80 {dimension_numbers = #tpu.dot_dimension_numbers<[1], [0], [0], [1], [0, 0, 1, 1], [], []>} : vector<2x32xf32>, vector<32x96xf32>, vector<2x96xf32> -> vector<2x96xf32>
    %254 = vector.broadcast %204 : vector<1x96xf32> to vector<2x96xf32>
    %255 = arith.addf %253, %254 : vector<2x96xf32>
    %256 = vector.extract_strided_slice %252 {offsets = [0, 0], sizes = [2, 64], strides = [1, 1]} : vector<2x96xf32> to vector<2x64xf32>
    %257 = vector.extract_strided_slice %255 {offsets = [0, 0], sizes = [2, 64], strides = [1, 1]} : vector<2x96xf32> to vector<2x64xf32>
    %258 = arith.addf %256, %257 : vector<2x64xf32>
    %259 = arith.negf %258 : vector<2x64xf32>
    %260 = math.exp %259 : vector<2x64xf32>
    %cst_81 = arith.constant 1.000000e+00 : f32
    %261 = vector.broadcast %cst_81 : f32 to vector<2x64xf32>
    %262 = arith.addf %261, %260 : vector<2x64xf32>
    %263 = arith.divf %261, %262 : vector<2x64xf32>
    %264 = vector.extract_strided_slice %263 {offsets = [0, 0], sizes = [2, 32], strides = [1, 1]} : vector<2x64xf32> to vector<2x32xf32>
    %265 = vector.extract_strided_slice %263 {offsets = [0, 32], sizes = [2, 32], strides = [1, 1]} : vector<2x64xf32> to vector<2x32xf32>
    %266 = vector.extract_strided_slice %252 {offsets = [0, 64], sizes = [2, 32], strides = [1, 1]} : vector<2x96xf32> to vector<2x32xf32>
    %267 = vector.extract_strided_slice %255 {offsets = [0, 64], sizes = [2, 32], strides = [1, 1]} : vector<2x96xf32> to vector<2x32xf32>
    %268 = arith.mulf %264, %267 : vector<2x32xf32>
    %269 = arith.addf %266, %268 : vector<2x32xf32>
    %270 = math.tanh %269 : vector<2x32xf32>
    %271 = arith.subf %250, %270 : vector<2x32xf32>
    %272 = arith.mulf %265, %271 : vector<2x32xf32>
    %273 = arith.addf %270, %272 : vector<2x32xf32>
    %c4_82 = arith.constant 4 : index
    %c0_83 = arith.constant 0 : index
    %274 = vector.load %arg5[%c4_82, %c0_83] : memref<16x32xf32, #tpu.memory_space<vmem>>, vector<2x32xf32>
    tpu.vector_store %arg5[%c4_82, %c0_83], %273 {strides = array<i32>} : memref<16x32xf32, #tpu.memory_space<vmem>>, vector<2x32xf32>,
    %c6_84 = arith.constant 6 : index
    %c0_85 = arith.constant 0 : index
    %275 = vector.load %arg8[%c6_84, %c0_85] : memref<16x96xf32, #tpu.memory_space<vmem>>, vector<2x96xf32>
    %cst_86 = arith.constant dense<0.000000e+00> : vector<2x96xf32>
    %276 = tpu.matmul %273, %202, %cst_86 {dimension_numbers = #tpu.dot_dimension_numbers<[1], [0], [0], [1], [0, 0, 1, 1], [], []>} : vector<2x32xf32>, vector<32x96xf32>, vector<2x96xf32> -> vector<2x96xf32>
    %277 = vector.broadcast %204 : vector<1x96xf32> to vector<2x96xf32>
    %278 = arith.addf %276, %277 : vector<2x96xf32>
    %279 = vector.extract_strided_slice %275 {offsets = [0, 0], sizes = [2, 64], strides = [1, 1]} : vector<2x96xf32> to vector<2x64xf32>
    %280 = vector.extract_strided_slice %278 {offsets = [0, 0], sizes = [2, 64], strides = [1, 1]} : vector<2x96xf32> to vector<2x64xf32>
    %281 = arith.addf %279, %280 : vector<2x64xf32>
    %282 = arith.negf %281 : vector<2x64xf32>
    %283 = math.exp %282 : vector<2x64xf32>
    %cst_87 = arith.constant 1.000000e+00 : f32
    %284 = vector.broadcast %cst_87 : f32 to vector<2x64xf32>
    %285 = arith.addf %284, %283 : vector<2x64xf32>
    %286 = arith.divf %284, %285 : vector<2x64xf32>
    %287 = vector.extract_strided_slice %286 {offsets = [0, 0], sizes = [2, 32], strides = [1, 1]} : vector<2x64xf32> to vector<2x32xf32>
    %288 = vector.extract_strided_slice %286 {offsets = [0, 32], sizes = [2, 32], strides = [1, 1]} : vector<2x64xf32> to vector<2x32xf32>
    %289 = vector.extract_strided_slice %275 {offsets = [0, 64], sizes = [2, 32], strides = [1, 1]} : vector<2x96xf32> to vector<2x32xf32>
    %290 = vector.extract_strided_slice %278 {offsets = [0, 64], sizes = [2, 32], strides = [1, 1]} : vector<2x96xf32> to vector<2x32xf32>
    %291 = arith.mulf %287, %290 : vector<2x32xf32>
    %292 = arith.addf %289, %291 : vector<2x32xf32>
    %293 = math.tanh %292 : vector<2x32xf32>
    %294 = arith.subf %273, %293 : vector<2x32xf32>
    %295 = arith.mulf %288, %294 : vector<2x32xf32>
    %296 = arith.addf %293, %295 : vector<2x32xf32>
    %c6_88 = arith.constant 6 : index
    %c0_89 = arith.constant 0 : index
    %297 = vector.load %arg5[%c6_88, %c0_89] : memref<16x32xf32, #tpu.memory_space<vmem>>, vector<2x32xf32>
    tpu.vector_store %arg5[%c6_88, %c0_89], %296 {strides = array<i32>} : memref<16x32xf32, #tpu.memory_space<vmem>>, vector<2x32xf32>,
    %c8_90 = arith.constant 8 : index
    %c0_91 = arith.constant 0 : index
    %298 = vector.load %arg8[%c8_90, %c0_91] : memref<16x96xf32, #tpu.memory_space<vmem>>, vector<2x96xf32>
    %cst_92 = arith.constant dense<0.000000e+00> : vector<2x96xf32>
    %299 = tpu.matmul %296, %202, %cst_92 {dimension_numbers = #tpu.dot_dimension_numbers<[1], [0], [0], [1], [0, 0, 1, 1], [], []>} : vector<2x32xf32>, vector<32x96xf32>, vector<2x96xf32> -> vector<2x96xf32>
    %300 = vector.broadcast %204 : vector<1x96xf32> to vector<2x96xf32>
    %301 = arith.addf %299, %300 : vector<2x96xf32>
    %302 = vector.extract_strided_slice %298 {offsets = [0, 0], sizes = [2, 64], strides = [1, 1]} : vector<2x96xf32> to vector<2x64xf32>
    %303 = vector.extract_strided_slice %301 {offsets = [0, 0], sizes = [2, 64], strides = [1, 1]} : vector<2x96xf32> to vector<2x64xf32>
    %304 = arith.addf %302, %303 : vector<2x64xf32>
    %305 = arith.negf %304 : vector<2x64xf32>
    %306 = math.exp %305 : vector<2x64xf32>
    %cst_93 = arith.constant 1.000000e+00 : f32
    %307 = vector.broadcast %cst_93 : f32 to vector<2x64xf32>
    %308 = arith.addf %307, %306 : vector<2x64xf32>
    %309 = arith.divf %307, %308 : vector<2x64xf32>
    %310 = vector.extract_strided_slice %309 {offsets = [0, 0], sizes = [2, 32], strides = [1, 1]} : vector<2x64xf32> to vector<2x32xf32>
    %311 = vector.extract_strided_slice %309 {offsets = [0, 32], sizes = [2, 32], strides = [1, 1]} : vector<2x64xf32> to vector<2x32xf32>
    %312 = vector.extract_strided_slice %298 {offsets = [0, 64], sizes = [2, 32], strides = [1, 1]} : vector<2x96xf32> to vector<2x32xf32>
    %313 = vector.extract_strided_slice %301 {offsets = [0, 64], sizes = [2, 32], strides = [1, 1]} : vector<2x96xf32> to vector<2x32xf32>
    %314 = arith.mulf %310, %313 : vector<2x32xf32>
    %315 = arith.addf %312, %314 : vector<2x32xf32>
    %316 = math.tanh %315 : vector<2x32xf32>
    %317 = arith.subf %296, %316 : vector<2x32xf32>
    %318 = arith.mulf %311, %317 : vector<2x32xf32>
    %319 = arith.addf %316, %318 : vector<2x32xf32>
    %c8_94 = arith.constant 8 : index
    %c0_95 = arith.constant 0 : index
    %320 = vector.load %arg5[%c8_94, %c0_95] : memref<16x32xf32, #tpu.memory_space<vmem>>, vector<2x32xf32>
    tpu.vector_store %arg5[%c8_94, %c0_95], %319 {strides = array<i32>} : memref<16x32xf32, #tpu.memory_space<vmem>>, vector<2x32xf32>,
    %c10_96 = arith.constant 10 : index
    %c0_97 = arith.constant 0 : index
    %321 = vector.load %arg8[%c10_96, %c0_97] : memref<16x96xf32, #tpu.memory_space<vmem>>, vector<2x96xf32>
    %cst_98 = arith.constant dense<0.000000e+00> : vector<2x96xf32>
    %322 = tpu.matmul %319, %202, %cst_98 {dimension_numbers = #tpu.dot_dimension_numbers<[1], [0], [0], [1], [0, 0, 1, 1], [], []>} : vector<2x32xf32>, vector<32x96xf32>, vector<2x96xf32> -> vector<2x96xf32>
    %323 = vector.broadcast %204 : vector<1x96xf32> to vector<2x96xf32>
    %324 = arith.addf %322, %323 : vector<2x96xf32>
    %325 = vector.extract_strided_slice %321 {offsets = [0, 0], sizes = [2, 64], strides = [1, 1]} : vector<2x96xf32> to vector<2x64xf32>
    %326 = vector.extract_strided_slice %324 {offsets = [0, 0], sizes = [2, 64], strides = [1, 1]} : vector<2x96xf32> to vector<2x64xf32>
    %327 = arith.addf %325, %326 : vector<2x64xf32>
    %328 = arith.negf %327 : vector<2x64xf32>
    %329 = math.exp %328 : vector<2x64xf32>
    %cst_99 = arith.constant 1.000000e+00 : f32
    %330 = vector.broadcast %cst_99 : f32 to vector<2x64xf32>
    %331 = arith.addf %330, %329 : vector<2x64xf32>
    %332 = arith.divf %330, %331 : vector<2x64xf32>
    %333 = vector.extract_strided_slice %332 {offsets = [0, 0], sizes = [2, 32], strides = [1, 1]} : vector<2x64xf32> to vector<2x32xf32>
    %334 = vector.extract_strided_slice %332 {offsets = [0, 32], sizes = [2, 32], strides = [1, 1]} : vector<2x64xf32> to vector<2x32xf32>
    %335 = vector.extract_strided_slice %321 {offsets = [0, 64], sizes = [2, 32], strides = [1, 1]} : vector<2x96xf32> to vector<2x32xf32>
    %336 = vector.extract_strided_slice %324 {offsets = [0, 64], sizes = [2, 32], strides = [1, 1]} : vector<2x96xf32> to vector<2x32xf32>
    %337 = arith.mulf %333, %336 : vector<2x32xf32>
    %338 = arith.addf %335, %337 : vector<2x32xf32>
    %339 = math.tanh %338 : vector<2x32xf32>
    %340 = arith.subf %319, %339 : vector<2x32xf32>
    %341 = arith.mulf %334, %340 : vector<2x32xf32>
    %342 = arith.addf %339, %341 : vector<2x32xf32>
    %c10_100 = arith.constant 10 : index
    %c0_101 = arith.constant 0 : index
    %343 = vector.load %arg5[%c10_100, %c0_101] : memref<16x32xf32, #tpu.memory_space<vmem>>, vector<2x32xf32>
    tpu.vector_store %arg5[%c10_100, %c0_101], %342 {strides = array<i32>} : memref<16x32xf32, #tpu.memory_space<vmem>>, vector<2x32xf32>,
    %c12_102 = arith.constant 12 : index
    %c0_103 = arith.constant 0 : index
    %344 = vector.load %arg8[%c12_102, %c0_103] : memref<16x96xf32, #tpu.memory_space<vmem>>, vector<2x96xf32>
    %cst_104 = arith.constant dense<0.000000e+00> : vector<2x96xf32>
    %345 = tpu.matmul %342, %202, %cst_104 {dimension_numbers = #tpu.dot_dimension_numbers<[1], [0], [0], [1], [0, 0, 1, 1], [], []>} : vector<2x32xf32>, vector<32x96xf32>, vector<2x96xf32> -> vector<2x96xf32>
    %346 = vector.broadcast %204 : vector<1x96xf32> to vector<2x96xf32>
    %347 = arith.addf %345, %346 : vector<2x96xf32>
    %348 = vector.extract_strided_slice %344 {offsets = [0, 0], sizes = [2, 64], strides = [1, 1]} : vector<2x96xf32> to vector<2x64xf32>
    %349 = vector.extract_strided_slice %347 {offsets = [0, 0], sizes = [2, 64], strides = [1, 1]} : vector<2x96xf32> to vector<2x64xf32>
    %350 = arith.addf %348, %349 : vector<2x64xf32>
    %351 = arith.negf %350 : vector<2x64xf32>
    %352 = math.exp %351 : vector<2x64xf32>
    %cst_105 = arith.constant 1.000000e+00 : f32
    %353 = vector.broadcast %cst_105 : f32 to vector<2x64xf32>
    %354 = arith.addf %353, %352 : vector<2x64xf32>
    %355 = arith.divf %353, %354 : vector<2x64xf32>
    %356 = vector.extract_strided_slice %355 {offsets = [0, 0], sizes = [2, 32], strides = [1, 1]} : vector<2x64xf32> to vector<2x32xf32>
    %357 = vector.extract_strided_slice %355 {offsets = [0, 32], sizes = [2, 32], strides = [1, 1]} : vector<2x64xf32> to vector<2x32xf32>
    %358 = vector.extract_strided_slice %344 {offsets = [0, 64], sizes = [2, 32], strides = [1, 1]} : vector<2x96xf32> to vector<2x32xf32>
    %359 = vector.extract_strided_slice %347 {offsets = [0, 64], sizes = [2, 32], strides = [1, 1]} : vector<2x96xf32> to vector<2x32xf32>
    %360 = arith.mulf %356, %359 : vector<2x32xf32>
    %361 = arith.addf %358, %360 : vector<2x32xf32>
    %362 = math.tanh %361 : vector<2x32xf32>
    %363 = arith.subf %342, %362 : vector<2x32xf32>
    %364 = arith.mulf %357, %363 : vector<2x32xf32>
    %365 = arith.addf %362, %364 : vector<2x32xf32>
    %c12_106 = arith.constant 12 : index
    %c0_107 = arith.constant 0 : index
    %366 = vector.load %arg5[%c12_106, %c0_107] : memref<16x32xf32, #tpu.memory_space<vmem>>, vector<2x32xf32>
    tpu.vector_store %arg5[%c12_106, %c0_107], %365 {strides = array<i32>} : memref<16x32xf32, #tpu.memory_space<vmem>>, vector<2x32xf32>,
    %c14_108 = arith.constant 14 : index
    %c0_109 = arith.constant 0 : index
    %367 = vector.load %arg8[%c14_108, %c0_109] : memref<16x96xf32, #tpu.memory_space<vmem>>, vector<2x96xf32>
    %cst_110 = arith.constant dense<0.000000e+00> : vector<2x96xf32>
    %368 = tpu.matmul %365, %202, %cst_110 {dimension_numbers = #tpu.dot_dimension_numbers<[1], [0], [0], [1], [0, 0, 1, 1], [], []>} : vector<2x32xf32>, vector<32x96xf32>, vector<2x96xf32> -> vector<2x96xf32>
    %369 = vector.broadcast %204 : vector<1x96xf32> to vector<2x96xf32>
    %370 = arith.addf %368, %369 : vector<2x96xf32>
    %371 = vector.extract_strided_slice %367 {offsets = [0, 0], sizes = [2, 64], strides = [1, 1]} : vector<2x96xf32> to vector<2x64xf32>
    %372 = vector.extract_strided_slice %370 {offsets = [0, 0], sizes = [2, 64], strides = [1, 1]} : vector<2x96xf32> to vector<2x64xf32>
    %373 = arith.addf %371, %372 : vector<2x64xf32>
    %374 = arith.negf %373 : vector<2x64xf32>
    %375 = math.exp %374 : vector<2x64xf32>
    %cst_111 = arith.constant 1.000000e+00 : f32
    %376 = vector.broadcast %cst_111 : f32 to vector<2x64xf32>
    %377 = arith.addf %376, %375 : vector<2x64xf32>
    %378 = arith.divf %376, %377 : vector<2x64xf32>
    %379 = vector.extract_strided_slice %378 {offsets = [0, 0], sizes = [2, 32], strides = [1, 1]} : vector<2x64xf32> to vector<2x32xf32>
    %380 = vector.extract_strided_slice %378 {offsets = [0, 32], sizes = [2, 32], strides = [1, 1]} : vector<2x64xf32> to vector<2x32xf32>
    %381 = vector.extract_strided_slice %367 {offsets = [0, 64], sizes = [2, 32], strides = [1, 1]} : vector<2x96xf32> to vector<2x32xf32>
    %382 = vector.extract_strided_slice %370 {offsets = [0, 64], sizes = [2, 32], strides = [1, 1]} : vector<2x96xf32> to vector<2x32xf32>
    %383 = arith.mulf %379, %382 : vector<2x32xf32>
    %384 = arith.addf %381, %383 : vector<2x32xf32>
    %385 = math.tanh %384 : vector<2x32xf32>
    %386 = arith.subf %365, %385 : vector<2x32xf32>
    %387 = arith.mulf %380, %386 : vector<2x32xf32>
    %388 = arith.addf %385, %387 : vector<2x32xf32>
    %c14_112 = arith.constant 14 : index
    %c0_113 = arith.constant 0 : index
    %389 = vector.load %arg5[%c14_112, %c0_113] : memref<16x32xf32, #tpu.memory_space<vmem>>, vector<2x32xf32>
    tpu.vector_store %arg5[%c14_112, %c0_113], %388 {strides = array<i32>} : memref<16x32xf32, #tpu.memory_space<vmem>>, vector<2x32xf32>,
    %c1_114 = arith.constant 1 : index
    %c0_115 = arith.constant 0 : index
    %c0_116 = arith.constant 0 : index
    %390 = vector.load %arg6[%c1_114, %c0_115, %c0_116] : memref<2x2x32xf32, #tpu.memory_space<vmem>>, vector<1x2x32xf32>
    %391 = vector.shape_cast %390 : vector<1x2x32xf32> to vector<2x32xf32>
    %392 = vector.shape_cast %388 : vector<2x32xf32> to vector<1x2x32xf32>
    tpu.vector_store %arg6[%c1_114, %c0_115, %c0_116], %392 {strides = array<i32>} : memref<2x2x32xf32, #tpu.memory_space<vmem>>, vector<1x2x32xf32>,
    return
  }
}

</mosaic_0001>

<llo_original>
// kernel: seq2seq_encoder_forward.1
$region0: #{seq2seq_encoder_forward.1}
  #allocation0 [shape = 'u32[]', space=smem, size = 0x4, offset = 0x4, fixed_abs, tag = 'smem constant byte address 0x4 - core index']
  #allocation1 [shape = 'u32[144,128]{1,0:T(1,128)}', space=vmem, size = 0x12000, scoped, tag = 'internal scratch']
  #allocation2 [shape = 'f32[16,32]{1,0:T(8,128)}', space=vmem, size = 0x2000, scoped, tag = 'scratch operand']
  #allocation3 [shape = 'f32[16,96]{1,0:T(8,128)}', space=vmem, size = 0x2000, scoped, tag = 'scratch operand']
  %s0 = inlined_call_operand.vmem [shape: f32[16,96], index: 0, kind: input, shape index: {}]
  %s1 = inlined_call_operand.vmem [shape: f32[1,32,96], index: 1, kind: input, shape index: {}]
  %s2 = inlined_call_operand.vmem [shape: f32[1,1,96], index: 2, kind: input, shape index: {}]
  %s3 = inlined_call_operand.vmem [shape: f32[2,32,96], index: 3, kind: input, shape index: {}]
  %s4 = inlined_call_operand.vmem [shape: f32[2,1,96], index: 4, kind: input, shape index: {}]
  %s5 = inlined_call_operand.hbm [shape: f32[16,32], index: 5, kind: output, shape index: {0}]
  %s6 = inlined_call_operand.hbm [shape: f32[2,2,32], index: 6, kind: output, shape index: {1}]
  %7 = xla_tuple %s5, %s6
  %s8 = sld [smem:[#allocation0]]
  $region38: #{seq2seq_encoder_forward.1} parent=0
    _
  %s10 = ssub.s32 1, %s8
  %s11 = scalar_select 0, %s10, %s8
  $region1: #{seq2seq_encoder_forward.1} parent=0
    #allocation4 [shape = 'u8[8192]{0}', space=vmem, size = 0x2000, scoped, tag = 'output window, operand 0, single buffered']
    #allocation5 [shape = 's32[1]{0}', space=sflag, size = 0x4, scoped, tag = 'scoped memory for seq2seq_encoder_forward.1']
    #allocation6 [shape = 'u8[2048]{0}', space=vmem, size = 0x800, scoped, tag = 'output window, operand 1, single buffered']
    #allocation7 [shape = 's32[1]{0}', space=sflag, size = 0x4, scoped, tag = 'scoped memory for seq2seq_encoder_forward.1']
    %12 = vsyncpa [#allocation5], 0
    %13 = vsyncpa [#allocation7], 0
    // Predicated region
    $region2: #{seq2seq_encoder_forward.1} parent=1 // pred_check
      _
    $region3: #{seq2seq_encoder_forward.1} parent=1 // pred_check_branch
      %15 = sbr.rel (0) target = $region5
    $region4: #{seq2seq_encoder_forward.1} parent=1 // pred_region
      _
    $region5: #{seq2seq_encoder_forward.1} parent=1 // pred_fallthru
      _
    // Predicated region
    $region6: #{seq2seq_encoder_forward.1} parent=1 // pred_check
      _
    $region7: #{seq2seq_encoder_forward.1} parent=1 // pred_check_branch
      %17 = sbr.rel (0) target = $region9
    $region8: #{seq2seq_encoder_forward.1} parent=1 // pred_region
      _
    $region9: #{seq2seq_encoder_forward.1} parent=1 // pred_fallthru
      _
    // Predicated region
    $region10: #{seq2seq_encoder_forward.1} parent=1 // pred_check
      _
    $region11: #{seq2seq_encoder_forward.1} parent=1 // pred_check_branch
      %19 = sbr.rel (0) target = $region13
    $region12: #{seq2seq_encoder_forward.1} parent=1 // pred_region
      _
    $region13: #{seq2seq_encoder_forward.1} parent=1 // pred_fallthru
      _
    // Predicated region
    $region14: #{seq2seq_encoder_forward.1} parent=1 // pred_check
      _
    $region15: #{seq2seq_encoder_forward.1} parent=1 // pred_check_branch
      %21 = sbr.rel (0) target = $region17
    $region16: #{seq2seq_encoder_forward.1} parent=1 // pred_region
      _
    $region17: #{seq2seq_encoder_forward.1} parent=1 // pred_fallthru
      _
    // Predicated region
    $region18: #{seq2seq_encoder_forward.1} parent=1 // pred_check
      _
    $region19: #{seq2seq_encoder_forward.1} parent=1 // pred_check_branch
      %23 = sbr.rel (0) target = $region21
    $region20: #{seq2seq_encoder_forward.1} parent=1 // pred_region
      _
    $region21: #{seq2seq_encoder_forward.1} parent=1 // pred_fallthru
      _
    %v24 = vld [vmem:[%s3] sm:$0xff]
    %v25 = vld [vmem:[%s3 + $0x8] sm:$0xff]
    %v26 = vld [vmem:[%s3 + $0x10] sm:$0xff]
    %v27 = vld [vmem:[%s3 + $0x18] sm:$0xff]
    %v28 = vld [vmem:[%s4] sm:$0x1]
    %v29 = vld [vmem:[%s0] sm:$0x3]
    %v31 = vlaneseq
    %v32 = vshrl.u32 %v31, 7
    %v33 = vsub.s32 0, %v32
    %v34 = vrot.slane %v28, %v33
    %vm36 = vcmask 261120
    %v38 = vsel %vm36, 0.0, 0
    %40 = vmatprep.subr.mxu0 0.0
    %41 = vmatpush1.msra.mxu0 %v24
    %42 = vmatprep.subr.mxu0 0.0
    %43 = vmatpush1.msra.mxu0 %v25
    %44 = vmatprep.subr.mxu0 0.0
    %45 = vmatpush1.msra.mxu0 %v26
    %46 = vmatprep.subr.mxu0 0.0
    %47 = vmatpush1.msra.mxu0 %v27
    %48 = vmatprep.subr.mxu0 0.0
    %49 = vmatpush1.msra.mxu0 0.0
    %50 = vmatprep.subr.mxu0 0.0
    %51 = vmatpush1.msra.mxu0 0.0
    %52 = vmatprep.subr.mxu0 0.0
    %53 = vmatpush1.msra.mxu0 0.0
    %54 = vmatprep.subr.mxu0 0.0
    %55 = vmatpush1.msra.mxu0 0.0
    %56 = vmatprep.subr.mxu0 0.0
    %57 = vmatpush1.msra.mxu0 0.0
    %58 = vmatprep.subr.mxu0 0.0
    %59 = vmatpush1.msra.mxu0 0.0
    %60 = vmatprep.subr.mxu0 0.0
    %61 = vmatpush1.msra.mxu0 0.0
    %62 = vmatprep.subr.mxu0 0.0
    %63 = vmatpush1.msra.mxu0 0.0
    %64 = vmatprep.subr.mxu0 0.0
    %65 = vmatpush1.msra.mxu0 0.0
    %66 = vmatprep.subr.mxu0 0.0
    %67 = vmatpush1.msra.mxu0 0.0
    %68 = vmatprep.subr.mxu0 0.0
    %69 = vmatpush1.msra.mxu0 0.0
    %70 = vmatprep.subr.mxu0 0.0
    %71 = vmatpush1.msra.mxu0 0.0
    %72 = vmatprep.subr.mxu0 0.0
    %73 = vmatpush1.msra.mxu0 0.0
    %74 = vmatprep.subr.mxu0 0.0
    %75 = vmatpush1.msra.mxu0 0.0
    %76 = vmatprep.subr.mxu0 0.0
    %77 = vmatpush1.msra.mxu0 0.0
    %78 = vmatprep.subr.mxu0 0.0
    %79 = vmatpush1.msra.mxu0 0.0
    %80 = vmatprep.subr.mxu0 0.0
    %81 = vmatpush1.msra.mxu0 0.0
    %82 = vmatprep.subr.mxu0 0.0
    %83 = vmatpush1.msra.mxu0 0.0
    %84 = vmatprep.subr.mxu0 0.0
    %85 = vmatpush1.msra.mxu0 0.0
    %86 = vmatprep.subr.mxu0 0.0
    %87 = vmatpush1.msra.mxu0 0.0
    %88 = vmatprep.subr.mxu0 0.0
    %89 = vmatpush1.msra.mxu0 0.0
    %90 = vmatprep.subr.mxu0 0.0
    %91 = vmatpush1.msra.mxu0 0.0
    %92 = vmatprep.subr.mxu0 0.0
    %93 = vmatpush1.msra.mxu0 0.0
    %94 = vmatprep.subr.mxu0 0.0
    %95 = vmatpush1.msra.mxu0 0.0
    %96 = vmatprep.subr.mxu0 0.0
    %97 = vmatpush1.msra.mxu0 0.0
    %98 = vmatprep.subr.mxu0 0.0
    %99 = vmatpush1.msra.mxu0 0.0
    %100 = vmatprep.subr.mxu0 0.0
    %101 = vmatpush1.msra.mxu0 0.0
    %102 = vmatprep.subr.mxu0 0.0
    %103 = vmatpush1.msra.mxu0 0.0
    %104 = vmatprep.mubr.f32.mxu0 0.0
    %105 = vmatmul.mubr.f32.gmra.mrb[0].mxu0 %v38
    %v106 = vpop.f32.mrb[0].mxu0
    %v107 = vadd.f32 %v34, %v106
    %v108 = vpop.f32.mrb[0].mxu0
    %109 = vdwg.mxu0
    %v110 = vadd.f32 %v29, %v107
    %v111 = vxor.u32 %v110, 2147483648
    %v112 = vmul.f32 %v111, 1.442695
    %v113 = vpow.pop %v112
    %v114 = vadd.f32 %v113, 1.0
    %v115 = vrcp.pop %v114
    %v116 = vmul.f32 1.0, %v115
    %118 = vrot.lane.b32.xlu0 %v107, 64
    %v119 = vpop.permute.xlu0 %118
    %v121 = vmul.f32 %v116, %v119
    %123 = vrot.lane.b32.xlu0 %v121, 64
    %v124 = vpop.permute.xlu0 %123
    %v126 = vadd.f32 %v29, %v124
    %v127 = vtanh.pop %v126
    %v128 = vsub.f32 0.0, %v127
    %130 = vrot.lane.b32.xlu0 %v128, 96
    %v131 = vpop.permute.xlu0 %130
    %v133 = vmul.f32 %v116, %v131
    %135 = vrot.lane.b32.xlu0 %v133, 32
    %v136 = vpop.permute.xlu0 %135
    %v138 = vadd.f32 %v127, %v136
    %140 = vrot.lane.b32.xlu0 %v138, 64
    %v141 = vpop.permute.xlu0 %140
    %vm143 = vcmask 254976
    %144 = vst.msk [vmem:[#allocation2] sm:$0x3] %vm143, %v141
    %v145 = vld [vmem:[%s0 + $0x2] sm:$0x3]
    %v146 = vsel %vm36, %v141, 0
    %148 = vmatprep.subr.mxu0 0.0
    %149 = vmatpush1.msra.mxu0 %v24
    %150 = vmatprep.subr.mxu0 0.0
    %151 = vmatpush1.msra.mxu0 %v25
    %152 = vmatprep.subr.mxu0 0.0
    %153 = vmatpush1.msra.mxu0 %v26
    %154 = vmatprep.subr.mxu0 0.0
    %155 = vmatpush1.msra.mxu0 %v27
    %156 = vmatprep.subr.mxu0 0.0
    %157 = vmatpush1.msra.mxu0 0.0
    %158 = vmatprep.subr.mxu0 0.0
    %159 = vmatpush1.msra.mxu0 0.0
    %160 = vmatprep.subr.mxu0 0.0
    %161 = vmatpush1.msra.mxu0 0.0
    %162 = vmatprep.subr.mxu0 0.0
    %163 = vmatpush1.msra.mxu0 0.0
    %164 = vmatprep.subr.mxu0 0.0
    %165 = vmatpush1.msra.mxu0 0.0
    %166 = vmatprep.subr.mxu0 0.0
    %167 = vmatpush1.msra.mxu0 0.0
    %168 = vmatprep.subr.mxu0 0.0
    %169 = vmatpush1.msra.mxu0 0.0
    %170 = vmatprep.subr.mxu0 0.0
    %171 = vmatpush1.msra.mxu0 0.0
    %172 = vmatprep.subr.mxu0 0.0
    %173 = vmatpush1.msra.mxu0 0.0
    %174 = vmatprep.subr.mxu0 0.0
    %175 = vmatpush1.msra.mxu0 0.0
    %176 = vmatprep.subr.mxu0 0.0
    %177 = vmatpush1.msra.mxu0 0.0
    %178 = vmatprep.subr.mxu0 0.0
    %179 = vmatpush1.msra.mxu0 0.0
    %180 = vmatprep.subr.mxu0 0.0
    %181 = vmatpush1.msra.mxu0 0.0
    %182 = vmatprep.subr.mxu0 0.0
    %183 = vmatpush1.msra.mxu0 0.0
    %184 = vmatprep.subr.mxu0 0.0
    %185 = vmatpush1.msra.mxu0 0.0
    %186 = vmatprep.subr.mxu0 0.0
    %187 = vmatpush1.msra.mxu0 0.0
    %188 = vmatprep.subr.mxu0 0.0
    %189 = vmatpush1.msra.mxu0 0.0
    %190 = vmatprep.subr.mxu0 0.0
    %191 = vmatpush1.msra.mxu0 0.0
    %192 = vmatprep.subr.mxu0 0.0
    %193 = vmatpush1.msra.mxu0 0.0
    %194 = vmatprep.subr.mxu0 0.0
    %195 = vmatpush1.msra.mxu0 0.0
    %196 = vmatprep.subr.mxu0 0.0
    %197 = vmatpush1.msra.mxu0 0.0
    %198 = vmatprep.subr.mxu0 0.0
    %199 = vmatpush1.msra.mxu0 0.0
    %200 = vmatprep.subr.mxu0 0.0
    %201 = vmatpush1.msra.mxu0 0.0
    %202 = vmatprep.subr.mxu0 0.0
    %203 = vmatpush1.msra.mxu0 0.0
    %204 = vmatprep.subr.mxu0 0.0
    %205 = vmatpush1.msra.mxu0 0.0
    %206 = vmatprep.subr.mxu0 0.0
    %207 = vmatpush1.msra.mxu0 0.0
    %208 = vmatprep.subr.mxu0 0.0
    %209 = vmatpush1.msra.mxu0 0.0
    %210 = vmatprep.subr.mxu0 0.0
    %211 = vmatpush1.msra.mxu0 0.0
    %212 = vmatprep.mubr.f32.mxu0 0.0
    %213 = vmatmul.mubr.f32.gmra.mrb[0].mxu0 %v146
    %v214 = vpop.f32.mrb[0].mxu0
    %v215 = vadd.f32 %v34, %v214
    %v216 = vpop.f32.mrb[0].mxu0
    %217 = vdwg.mxu0
    %v218 = vadd.f32 %v145, %v215
    %v219 = vxor.u32 %v218, 2147483648
    %v220 = vmul.f32 %v219, 1.442695
    %v221 = vpow.pop %v220
    %v222 = vadd.f32 %v221, 1.0
    %v223 = vrcp.pop %v222
    %v224 = vmul.f32 1.0, %v223
    %226 = vrot.lane.b32.xlu0 %v215, 64
    %v227 = vpop.permute.xlu0 %226
    %v229 = vmul.f32 %v224, %v227
    %231 = vrot.lane.b32.xlu0 %v229, 64
    %v232 = vpop.permute.xlu0 %231
    %v234 = vadd.f32 %v145, %v232
    %v235 = vtanh.pop %v234
    %v236 = vsub.f32 %v138, %v235
    %238 = vrot.lane.b32.xlu0 %v236, 96
    %v239 = vpop.permute.xlu0 %238
    %v241 = vmul.f32 %v224, %v239
    %243 = vrot.lane.b32.xlu0 %v241, 32
    %v244 = vpop.permute.xlu0 %243
    %v246 = vadd.f32 %v235, %v244
    %248 = vrot.lane.b32.xlu0 %v246, 64
    %v249 = vpop.permute.xlu0 %248
    %251 = vst.msk [vmem:[#allocation2 + $0x2] sm:$0x3] %vm143, %v249
    %v252 = vld [vmem:[%s0 + $0x4] sm:$0x3]
    %v253 = vsel %vm36, %v249, 0
    %255 = vmatprep.subr.mxu0 0.0
    %256 = vmatpush1.msra.mxu0 %v24
    %257 = vmatprep.subr.mxu0 0.0
    %258 = vmatpush1.msra.mxu0 %v25
    %259 = vmatprep.subr.mxu0 0.0
    %260 = vmatpush1.msra.mxu0 %v26
    %261 = vmatprep.subr.mxu0 0.0
    %262 = vmatpush1.msra.mxu0 %v27
    %263 = vmatprep.subr.mxu0 0.0
    %264 = vmatpush1.msra.mxu0 0.0
    %265 = vmatprep.subr.mxu0 0.0
    %266 = vmatpush1.msra.mxu0 0.0
    %267 = vmatprep.subr.mxu0 0.0
    %268 = vmatpush1.msra.mxu0 0.0
    %269 = vmatprep.subr.mxu0 0.0
    %270 = vmatpush1.msra.mxu0 0.0
    %271 = vmatprep.subr.mxu0 0.0
    %272 = vmatpush1.msra.mxu0 0.0
    %273 = vmatprep.subr.mxu0 0.0
    %274 = vmatpush1.msra.mxu0 0.0
    %275 = vmatprep.subr.mxu0 0.0
    %276 = vmatpush1.msra.mxu0 0.0
    %277 = vmatprep.subr.mxu0 0.0
    %278 = vmatpush1.msra.mxu0 0.0
    %279 = vmatprep.subr.mxu0 0.0
    %280 = vmatpush1.msra.mxu0 0.0
    %281 = vmatprep.subr.mxu0 0.0
    %282 = vmatpush1.msra.mxu0 0.0
    %283 = vmatprep.subr.mxu0 0.0
    %284 = vmatpush1.msra.mxu0 0.0
    %285 = vmatprep.subr.mxu0 0.0
    %286 = vmatpush1.msra.mxu0 0.0
    %287 = vmatprep.subr.mxu0 0.0
    %288 = vmatpush1.msra.mxu0 0.0
    %289 = vmatprep.subr.mxu0 0.0
    %290 = vmatpush1.msra.mxu0 0.0
    %291 = vmatprep.subr.mxu0 0.0
    %292 = vmatpush1.msra.mxu0 0.0
    %293 = vmatprep.subr.mxu0 0.0
    %294 = vmatpush1.msra.mxu0 0.0
    %295 = vmatprep.subr.mxu0 0.0
    %296 = vmatpush1.msra.mxu0 0.0
    %297 = vmatprep.subr.mxu0 0.0
    %298 = vmatpush1.msra.mxu0 0.0
    %299 = vmatprep.subr.mxu0 0.0
    %300 = vmatpush1.msra.mxu0 0.0
    %301 = vmatprep.subr.mxu0 0.0
    %302 = vmatpush1.msra.mxu0 0.0
    %303 = vmatprep.subr.mxu0 0.0
    %304 = vmatpush1.msra.mxu0 0.0
    %305 = vmatprep.subr.mxu0 0.0
    %306 = vmatpush1.msra.mxu0 0.0
    %307 = vmatprep.subr.mxu0 0.0
    %308 = vmatpush1.msra.mxu0 0.0
    %309 = vmatprep.subr.mxu0 0.0
    %310 = vmatpush1.msra.mxu0 0.0
    %311 = vmatprep.subr.mxu0 0.0
    %312 = vmatpush1.msra.mxu0 0.0
    %313 = vmatprep.subr.mxu0 0.0
    %314 = vmatpush1.msra.mxu0 0.0
    %315 = vmatprep.subr.mxu0 0.0
    %316 = vmatpush1.msra.mxu0 0.0
    %317 = vmatprep.subr.mxu0 0.0
    %318 = vmatpush1.msra.mxu0 0.0
    %319 = vmatprep.mubr.f32.mxu0 0.0
    %320 = vmatmul.mubr.f32.gmra.mrb[0].mxu0 %v253
    %v321 = vpop.f32.mrb[0].mxu0
    %v322 = vadd.f32 %v34, %v321
    %v323 = vpop.f32.mrb[0].mxu0
    %324 = vdwg.mxu0
    %v325 = vadd.f32 %v252, %v322
    %v326 = vxor.u32 %v325, 2147483648
    %v327 = vmul.f32 %v326, 1.442695
    %v328 = vpow.pop %v327
    %v329 = vadd.f32 %v328, 1.0
    %v330 = vrcp.pop %v329
    %v331 = vmul.f32 1.0, %v330
    %333 = vrot.lane.b32.xlu0 %v322, 64
    %v334 = vpop.permute.xlu0 %333
    %v336 = vmul.f32 %v331, %v334
    %338 = vrot.lane.b32.xlu0 %v336, 64
    %v339 = vpop.permute.xlu0 %338
    %v341 = vadd.f32 %v252, %v339
    %v342 = vtanh.pop %v341
    %v343 = vsub.f32 %v246, %v342
    %345 = vrot.lane.b32.xlu0 %v343, 96
    %v346 = vpop.permute.xlu0 %345
    %v348 = vmul.f32 %v331, %v346
    %350 = vrot.lane.b32.xlu0 %v348, 32
    %v351 = vpop.permute.xlu0 %350
    %v353 = vadd.f32 %v342, %v351
    %355 = vrot.lane.b32.xlu0 %v353, 64
    %v356 = vpop.permute.xlu0 %355
    %358 = vst.msk [vmem:[#allocation2 + $0x4] sm:$0x3] %vm143, %v356
    %v359 = vld [vmem:[%s0 + $0x6] sm:$0x3]
    %v360 = vsel %vm36, %v356, 0
    %362 = vmatprep.subr.mxu0 0.0
    %363 = vmatpush1.msra.mxu0 %v24
    %364 = vmatprep.subr.mxu0 0.0
    %365 = vmatpush1.msra.mxu0 %v25
    %366 = vmatprep.subr.mxu0 0.0
    %367 = vmatpush1.msra.mxu0 %v26
    %368 = vmatprep.subr.mxu0 0.0
    %369 = vmatpush1.msra.mxu0 %v27
    %370 = vmatprep.subr.mxu0 0.0
    %371 = vmatpush1.msra.mxu0 0.0
    %372 = vmatprep.subr.mxu0 0.0
    %373 = vmatpush1.msra.mxu0 0.0
    %374 = vmatprep.subr.mxu0 0.0
    %375 = vmatpush1.msra.mxu0 0.0
    %376 = vmatprep.subr.mxu0 0.0
    %377 = vmatpush1.msra.mxu0 0.0
    %378 = vmatprep.subr.mxu0 0.0
    %379 = vmatpush1.msra.mxu0 0.0
    %380 = vmatprep.subr.mxu0 0.0
    %381 = vmatpush1.msra.mxu0 0.0
    %382 = vmatprep.subr.mxu0 0.0
    %383 = vmatpush1.msra.mxu0 0.0
    %384 = vmatprep.subr.mxu0 0.0
    %385 = vmatpush1.msra.mxu0 0.0
    %386 = vmatprep.subr.mxu0 0.0
    %387 = vmatpush1.msra.mxu0 0.0
    %388 = vmatprep.subr.mxu0 0.0
    %389 = vmatpush1.msra.mxu0 0.0
    %390 = vmatprep.subr.mxu0 0.0
    %391 = vmatpush1.msra.mxu0 0.0
    %392 = vmatprep.subr.mxu0 0.0
    %393 = vmatpush1.msra.mxu0 0.0
    %394 = vmatprep.subr.mxu0 0.0
    %395 = vmatpush1.msra.mxu0 0.0
    %396 = vmatprep.subr.mxu0 0.0
    %397 = vmatpush1.msra.mxu0 0.0
    %398 = vmatprep.subr.mxu0 0.0
    %399 = vmatpush1.msra.mxu0 0.0
    %400 = vmatprep.subr.mxu0 0.0
    %401 = vmatpush1.msra.mxu0 0.0
    %402 = vmatprep.subr.mxu0 0.0
    %403 = vmatpush1.msra.mxu0 0.0
    %404 = vmatprep.subr.mxu0 0.0
    %405 = vmatpush1.msra.mxu0 0.0
    %406 = vmatprep.subr.mxu0 0.0
    %407 = vmatpush1.msra.mxu0 0.0
    %408 = vmatprep.subr.mxu0 0.0
    %409 = vmatpush1.msra.mxu0 0.0
    %410 = vmatprep.subr.mxu0 0.0
    %411 = vmatpush1.msra.mxu0 0.0
    %412 = vmatprep.subr.mxu0 0.0
    %413 = vmatpush1.msra.mxu0 0.0
    %414 = vmatprep.subr.mxu0 0.0
    %415 = vmatpush1.msra.mxu0 0.0
    %416 = vmatprep.subr.mxu0 0.0
    %417 = vmatpush1.msra.mxu0 0.0
    %418 = vmatprep.subr.mxu0 0.0
    %419 = vmatpush1.msra.mxu0 0.0
    %420 = vmatprep.subr.mxu0 0.0
    %421 = vmatpush1.msra.mxu0 0.0
    %422 = vmatprep.subr.mxu0 0.0
    %423 = vmatpush1.msra.mxu0 0.0
    %424 = vmatprep.subr.mxu0 0.0
    %425 = vmatpush1.msra.mxu0 0.0
    %426 = vmatprep.mubr.f32.mxu0 0.0
    %427 = vmatmul.mubr.f32.gmra.mrb[0].mxu0 %v360
    %v428 = vpop.f32.mrb[0].mxu0
    %v429 = vadd.f32 %v34, %v428
    %v430 = vpop.f32.mrb[0].mxu0
    %431 = vdwg.mxu0
    %v432 = vadd.f32 %v359, %v429
    %v433 = vxor.u32 %v432, 2147483648
    %v434 = vmul.f32 %v433, 1.442695
    %v435 = vpow.pop %v434
    %v436 = vadd.f32 %v435, 1.0
    %v437 = vrcp.pop %v436
    %v438 = vmul.f32 1.0, %v437
    %440 = vrot.lane.b32.xlu0 %v429, 64
    %v441 = vpop.permute.xlu0 %440
    %v443 = vmul.f32 %v438, %v441
    %445 = vrot.lane.b32.xlu0 %v443, 64
    %v446 = vpop.permute.xlu0 %445
    %v448 = vadd.f32 %v359, %v446
    %v449 = vtanh.pop %v448
    %v450 = vsub.f32 %v353, %v449
    %452 = vrot.lane.b32.xlu0 %v450, 96
    %v453 = vpop.permute.xlu0 %452
    %v455 = vmul.f32 %v438, %v453
    %457 = vrot.lane.b32.xlu0 %v455, 32
    %v458 = vpop.permute.xlu0 %457
    %v460 = vadd.f32 %v449, %v458
    %462 = vrot.lane.b32.xlu0 %v460, 64
    %v463 = vpop.permute.xlu0 %462
    %465 = vst.msk [vmem:[#allocation2 + $0x6] sm:$0x3] %vm143, %v463
    %v466 = vld [vmem:[%s0 + $0x8] sm:$0x3]
    %v467 = vsel %vm36, %v463, 0
    %469 = vmatprep.subr.mxu0 0.0
    %470 = vmatpush1.msra.mxu0 %v24
    %471 = vmatprep.subr.mxu0 0.0
    %472 = vmatpush1.msra.mxu0 %v25
    %473 = vmatprep.subr.mxu0 0.0
    %474 = vmatpush1.msra.mxu0 %v26
    %475 = vmatprep.subr.mxu0 0.0
    %476 = vmatpush1.msra.mxu0 %v27
    %477 = vmatprep.subr.mxu0 0.0
    %478 = vmatpush1.msra.mxu0 0.0
    %479 = vmatprep.subr.mxu0 0.0
    %480 = vmatpush1.msra.mxu0 0.0
    %481 = vmatprep.subr.mxu0 0.0
    %482 = vmatpush1.msra.mxu0 0.0
    %483 = vmatprep.subr.mxu0 0.0
    %484 = vmatpush1.msra.mxu0 0.0
    %485 = vmatprep.subr.mxu0 0.0
    %486 = vmatpush1.msra.mxu0 0.0
    %487 = vmatprep.subr.mxu0 0.0
    %488 = vmatpush1.msra.mxu0 0.0
    %489 = vmatprep.subr.mxu0 0.0
    %490 = vmatpush1.msra.mxu0 0.0
    %491 = vmatprep.subr.mxu0 0.0
    %492 = vmatpush1.msra.mxu0 0.0
    %493 = vmatprep.subr.mxu0 0.0
    %494 = vmatpush1.msra.mxu0 0.0
    %495 = vmatprep.subr.mxu0 0.0
    %496 = vmatpush1.msra.mxu0 0.0
    %497 = vmatprep.subr.mxu0 0.0
    %498 = vmatpush1.msra.mxu0 0.0
    %499 = vmatprep.subr.mxu0 0.0
    %500 = vmatpush1.msra.mxu0 0.0
    %501 = vmatprep.subr.mxu0 0.0
    %502 = vmatpush1.msra.mxu0 0.0
    %503 = vmatprep.subr.mxu0 0.0
    %504 = vmatpush1.msra.mxu0 0.0
    %505 = vmatprep.subr.mxu0 0.0
    %506 = vmatpush1.msra.mxu0 0.0
    %507 = vmatprep.subr.mxu0 0.0
    %508 = vmatpush1.msra.mxu0 0.0
    %509 = vmatprep.subr.mxu0 0.0
    %510 = vmatpush1.msra.mxu0 0.0
    %511 = vmatprep.subr.mxu0 0.0
    %512 = vmatpush1.msra.mxu0 0.0
    %513 = vmatprep.subr.mxu0 0.0
    %514 = vmatpush1.msra.mxu0 0.0
    %515 = vmatprep.subr.mxu0 0.0
    %516 = vmatpush1.msra.mxu0 0.0
    %517 = vmatprep.subr.mxu0 0.0
    %518 = vmatpush1.msra.mxu0 0.0
    %519 = vmatprep.subr.mxu0 0.0
    %520 = vmatpush1.msra.mxu0 0.0
    %521 = vmatprep.subr.mxu0 0.0
    %522 = vmatpush1.msra.mxu0 0.0
    %523 = vmatprep.subr.mxu0 0.0
    %524 = vmatpush1.msra.mxu0 0.0
    %525 = vmatprep.subr.mxu0 0.0
    %526 = vmatpush1.msra.mxu0 0.0
    %527 = vmatprep.subr.mxu0 0.0
    %528 = vmatpush1.msra.mxu0 0.0
    %529 = vmatprep.subr.mxu0 0.0
    %530 = vmatpush1.msra.mxu0 0.0
    %531 = vmatprep.subr.mxu0 0.0
    %532 = vmatpush1.msra.mxu0 0.0
    %533 = vmatprep.mubr.f32.mxu0 0.0
    %534 = vmatmul.mubr.f32.gmra.mrb[0].mxu0 %v467
    %v535 = vpop.f32.mrb[0].mxu0
    %v536 = vadd.f32 %v34, %v535
    %v537 = vpop.f32.mrb[0].mxu0
    %538 = vdwg.mxu0
    %v539 = vadd.f32 %v466, %v536
    %v540 = vxor.u32 %v539, 2147483648
    %v541 = vmul.f32 %v540, 1.442695
    %v542 = vpow.pop %v541
    %v543 = vadd.f32 %v542, 1.0
    %v544 = vrcp.pop %v543
    %v545 = vmul.f32 1.0, %v544
    %547 = vrot.lane.b32.xlu0 %v536, 64
    %v548 = vpop.permute.xlu0 %547
    %v550 = vmul.f32 %v545, %v548
    %552 = vrot.lane.b32.xlu0 %v550, 64
    %v553 = vpop.permute.xlu0 %552
    %v555 = vadd.f32 %v466, %v553
    %v556 = vtanh.pop %v555
    %v557 = vsub.f32 %v460, %v556
    %559 = vrot.lane.b32.xlu0 %v557, 96
    %v560 = vpop.permute.xlu0 %559
    %v562 = vmul.f32 %v545, %v560
    %564 = vrot.lane.b32.xlu0 %v562, 32
    %v565 = vpop.permute.xlu0 %564
    %v567 = vadd.f32 %v556, %v565
    %569 = vrot.lane.b32.xlu0 %v567, 64
    %v570 = vpop.permute.xlu0 %569
    %572 = vst.msk [vmem:[#allocation2 + $0x8] sm:$0x3] %vm143, %v570
    %v573 = vld [vmem:[%s0 + $0xa] sm:$0x3]
    %v574 = vsel %vm36, %v570, 0
    %576 = vmatprep.subr.mxu0 0.0
    %577 = vmatpush1.msra.mxu0 %v24
    %578 = vmatprep.subr.mxu0 0.0
    %579 = vmatpush1.msra.mxu0 %v25
    %580 = vmatprep.subr.mxu0 0.0
    %581 = vmatpush1.msra.mxu0 %v26
    %582 = vmatprep.subr.mxu0 0.0
    %583 = vmatpush1.msra.mxu0 %v27
    %584 = vmatprep.subr.mxu0 0.0
    %585 = vmatpush1.msra.mxu0 0.0
    %586 = vmatprep.subr.mxu0 0.0
    %587 = vmatpush1.msra.mxu0 0.0
    %588 = vmatprep.subr.mxu0 0.0
    %589 = vmatpush1.msra.mxu0 0.0
    %590 = vmatprep.subr.mxu0 0.0
    %591 = vmatpush1.msra.mxu0 0.0
    %592 = vmatprep.subr.mxu0 0.0
    %593 = vmatpush1.msra.mxu0 0.0
    %594 = vmatprep.subr.mxu0 0.0
    %595 = vmatpush1.msra.mxu0 0.0
    %596 = vmatprep.subr.mxu0 0.0
    %597 = vmatpush1.msra.mxu0 0.0
    %598 = vmatprep.subr.mxu0 0.0
    %599 = vmatpush1.msra.mxu0 0.0
    %600 = vmatprep.subr.mxu0 0.0
    %601 = vmatpush1.msra.mxu0 0.0
    %602 = vmatprep.subr.mxu0 0.0
    %603 = vmatpush1.msra.mxu0 0.0
    %604 = vmatprep.subr.mxu0 0.0
    %605 = vmatpush1.msra.mxu0 0.0
    %606 = vmatprep.subr.mxu0 0.0
    %607 = vmatpush1.msra.mxu0 0.0
    %608 = vmatprep.subr.mxu0 0.0
    %609 = vmatpush1.msra.mxu0 0.0
    %610 = vmatprep.subr.mxu0 0.0
    %611 = vmatpush1.msra.mxu0 0.0
    %612 = vmatprep.subr.mxu0 0.0
    %613 = vmatpush1.msra.mxu0 0.0
    %614 = vmatprep.subr.mxu0 0.0
    %615 = vmatpush1.msra.mxu0 0.0
    %616 = vmatprep.subr.mxu0 0.0
    %617 = vmatpush1.msra.mxu0 0.0
    %618 = vmatprep.subr.mxu0 0.0
    %619 = vmatpush1.msra.mxu0 0.0
    %620 = vmatprep.subr.mxu0 0.0
    %621 = vmatpush1.msra.mxu0 0.0
    %622 = vmatprep.subr.mxu0 0.0
    %623 = vmatpush1.msra.mxu0 0.0
    %624 = vmatprep.subr.mxu0 0.0
    %625 = vmatpush1.msra.mxu0 0.0
    %626 = vmatprep.subr.mxu0 0.0
    %627 = vmatpush1.msra.mxu0 0.0
    %628 = vmatprep.subr.mxu0 0.0
    %629 = vmatpush1.msra.mxu0 0.0
    %630 = vmatprep.subr.mxu0 0.0
    %631 = vmatpush1.msra.mxu0 0.0
    %632 = vmatprep.subr.mxu0 0.0
    %633 = vmatpush1.msra.mxu0 0.0
    %634 = vmatprep.subr.mxu0 0.0
    %635 = vmatpush1.msra.mxu0 0.0
    %636 = vmatprep.subr.mxu0 0.0
    %637 = vmatpush1.msra.mxu0 0.0
    %638 = vmatprep.subr.mxu0 0.0
    %639 = vmatpush1.msra.mxu0 0.0
    %640 = vmatprep.mubr.f32.mxu0 0.0
    %641 = vmatmul.mubr.f32.gmra.mrb[0].mxu0 %v574
    %v642 = vpop.f32.mrb[0].mxu0
    %v643 = vadd.f32 %v34, %v642
    %v644 = vpop.f32.mrb[0].mxu0
    %645 = vdwg.mxu0
    %v646 = vadd.f32 %v573, %v643
    %v647 = vxor.u32 %v646, 2147483648
    %v648 = vmul.f32 %v647, 1.442695
    %v649 = vpow.pop %v648
    %v650 = vadd.f32 %v649, 1.0
    %v651 = vrcp.pop %v650
    %v652 = vmul.f32 1.0, %v651
    %654 = vrot.lane.b32.xlu0 %v643, 64
    %v655 = vpop.permute.xlu0 %654
    %v657 = vmul.f32 %v652, %v655
    %659 = vrot.lane.b32.xlu0 %v657, 64
    %v660 = vpop.permute.xlu0 %659
    %v662 = vadd.f32 %v573, %v660
    %v663 = vtanh.pop %v662
    %v664 = vsub.f32 %v567, %v663
    %666 = vrot.lane.b32.xlu0 %v664, 96
    %v667 = vpop.permute.xlu0 %666
    %v669 = vmul.f32 %v652, %v667
    %671 = vrot.lane.b32.xlu0 %v669, 32
    %v672 = vpop.permute.xlu0 %671
    %v674 = vadd.f32 %v663, %v672
    %676 = vrot.lane.b32.xlu0 %v674, 64
    %v677 = vpop.permute.xlu0 %676
    %679 = vst.msk [vmem:[#allocation2 + $0xa] sm:$0x3] %vm143, %v677
    %v680 = vld [vmem:[%s0 + $0xc] sm:$0x3]
    %v681 = vsel %vm36, %v677, 0
    %683 = vmatprep.subr.mxu0 0.0
    %684 = vmatpush1.msra.mxu0 %v24
    %685 = vmatprep.subr.mxu0 0.0
    %686 = vmatpush1.msra.mxu0 %v25
    %687 = vmatprep.subr.mxu0 0.0
    %688 = vmatpush1.msra.mxu0 %v26
    %689 = vmatprep.subr.mxu0 0.0
    %690 = vmatpush1.msra.mxu0 %v27
    %691 = vmatprep.subr.mxu0 0.0
    %692 = vmatpush1.msra.mxu0 0.0
    %693 = vmatprep.subr.mxu0 0.0
    %694 = vmatpush1.msra.mxu0 0.0
    %695 = vmatprep.subr.mxu0 0.0
    %696 = vmatpush1.msra.mxu0 0.0
    %697 = vmatprep.subr.mxu0 0.0
    %698 = vmatpush1.msra.mxu0 0.0
    %699 = vmatprep.subr.mxu0 0.0
    %700 = vmatpush1.msra.mxu0 0.0
    %701 = vmatprep.subr.mxu0 0.0
    %702 = vmatpush1.msra.mxu0 0.0
    %703 = vmatprep.subr.mxu0 0.0
    %704 = vmatpush1.msra.mxu0 0.0
    %705 = vmatprep.subr.mxu0 0.0
    %706 = vmatpush1.msra.mxu0 0.0
    %707 = vmatprep.subr.mxu0 0.0
    %708 = vmatpush1.msra.mxu0 0.0
    %709 = vmatprep.subr.mxu0 0.0
    %710 = vmatpush1.msra.mxu0 0.0
    %711 = vmatprep.subr.mxu0 0.0
    %712 = vmatpush1.msra.mxu0 0.0
    %713 = vmatprep.subr.mxu0 0.0
    %714 = vmatpush1.msra.mxu0 0.0
    %715 = vmatprep.subr.mxu0 0.0
    %716 = vmatpush1.msra.mxu0 0.0
    %717 = vmatprep.subr.mxu0 0.0
    %718 = vmatpush1.msra.mxu0 0.0
    %719 = vmatprep.subr.mxu0 0.0
    %720 = vmatpush1.msra.mxu0 0.0
    %721 = vmatprep.subr.mxu0 0.0
    %722 = vmatpush1.msra.mxu0 0.0
    %723 = vmatprep.subr.mxu0 0.0
    %724 = vmatpush1.msra.mxu0 0.0
    %725 = vmatprep.subr.mxu0 0.0
    %726 = vmatpush1.msra.mxu0 0.0
    %727 = vmatprep.subr.mxu0 0.0
    %728 = vmatpush1.msra.mxu0 0.0
    %729 = vmatprep.subr.mxu0 0.0
    %730 = vmatpush1.msra.mxu0 0.0
    %731 = vmatprep.subr.mxu0 0.0
    %732 = vmatpush1.msra.mxu0 0.0
    %733 = vmatprep.subr.mxu0 0.0
    %734 = vmatpush1.msra.mxu0 0.0
    %735 = vmatprep.subr.mxu0 0.0
    %736 = vmatpush1.msra.mxu0 0.0
    %737 = vmatprep.subr.mxu0 0.0
    %738 = vmatpush1.msra.mxu0 0.0
    %739 = vmatprep.subr.mxu0 0.0
    %740 = vmatpush1.msra.mxu0 0.0
    %741 = vmatprep.subr.mxu0 0.0
    %742 = vmatpush1.msra.mxu0 0.0
    %743 = vmatprep.subr.mxu0 0.0
    %744 = vmatpush1.msra.mxu0 0.0
    %745 = vmatprep.subr.mxu0 0.0
    %746 = vmatpush1.msra.mxu0 0.0
    %747 = vmatprep.mubr.f32.mxu0 0.0
    %748 = vmatmul.mubr.f32.gmra.mrb[0].mxu0 %v681
    %v749 = vpop.f32.mrb[0].mxu0
    %v750 = vadd.f32 %v34, %v749
    %v751 = vpop.f32.mrb[0].mxu0
    %752 = vdwg.mxu0
    %v753 = vadd.f32 %v680, %v750
    %v754 = vxor.u32 %v753, 2147483648
    %v755 = vmul.f32 %v754, 1.442695
    %v756 = vpow.pop %v755
    %v757 = vadd.f32 %v756, 1.0
    %v758 = vrcp.pop %v757
    %v759 = vmul.f32 1.0, %v758
    %761 = vrot.lane.b32.xlu0 %v750, 64
    %v762 = vpop.permute.xlu0 %761
    %v764 = vmul.f32 %v759, %v762
    %766 = vrot.lane.b32.xlu0 %v764, 64
    %v767 = vpop.permute.xlu0 %766
    %v769 = vadd.f32 %v680, %v767
    %v770 = vtanh.pop %v769
    %v771 = vsub.f32 %v674, %v770
    %773 = vrot.lane.b32.xlu0 %v771, 96
    %v774 = vpop.permute.xlu0 %773
    %v776 = vmul.f32 %v759, %v774
    %778 = vrot.lane.b32.xlu0 %v776, 32
    %v779 = vpop.permute.xlu0 %778
    %v781 = vadd.f32 %v770, %v779
    %783 = vrot.lane.b32.xlu0 %v781, 64
    %v784 = vpop.permute.xlu0 %783
    %786 = vst.msk [vmem:[#allocation2 + $0xc] sm:$0x3] %vm143, %v784
    %v787 = vld [vmem:[%s0 + $0xe] sm:$0x3]
    %v788 = vsel %vm36, %v784, 0
    %790 = vmatprep.subr.mxu0 0.0
    %791 = vmatpush1.msra.mxu0 %v24
    %792 = vmatprep.subr.mxu0 0.0
    %793 = vmatpush1.msra.mxu0 %v25
    %794 = vmatprep.subr.mxu0 0.0
    %795 = vmatpush1.msra.mxu0 %v26
    %796 = vmatprep.subr.mxu0 0.0
    %797 = vmatpush1.msra.mxu0 %v27
    %798 = vmatprep.subr.mxu0 0.0
    %799 = vmatpush1.msra.mxu0 0.0
    %800 = vmatprep.subr.mxu0 0.0
    %801 = vmatpush1.msra.mxu0 0.0
    %802 = vmatprep.subr.mxu0 0.0
    %803 = vmatpush1.msra.mxu0 0.0
    %804 = vmatprep.subr.mxu0 0.0
    %805 = vmatpush1.msra.mxu0 0.0
    %806 = vmatprep.subr.mxu0 0.0
    %807 = vmatpush1.msra.mxu0 0.0
    %808 = vmatprep.subr.mxu0 0.0
    %809 = vmatpush1.msra.mxu0 0.0
    %810 = vmatprep.subr.mxu0 0.0
    %811 = vmatpush1.msra.mxu0 0.0
    %812 = vmatprep.subr.mxu0 0.0
    %813 = vmatpush1.msra.mxu0 0.0
    %814 = vmatprep.subr.mxu0 0.0
    %815 = vmatpush1.msra.mxu0 0.0
    %816 = vmatprep.subr.mxu0 0.0
    %817 = vmatpush1.msra.mxu0 0.0
    %818 = vmatprep.subr.mxu0 0.0
    %819 = vmatpush1.msra.mxu0 0.0
    %820 = vmatprep.subr.mxu0 0.0
    %821 = vmatpush1.msra.mxu0 0.0
    %822 = vmatprep.subr.mxu0 0.0
    %823 = vmatpush1.msra.mxu0 0.0
    %824 = vmatprep.subr.mxu0 0.0
    %825 = vmatpush1.msra.mxu0 0.0
    %826 = vmatprep.subr.mxu0 0.0
    %827 = vmatpush1.msra.mxu0 0.0
    %828 = vmatprep.subr.mxu0 0.0
    %829 = vmatpush1.msra.mxu0 0.0
    %830 = vmatprep.subr.mxu0 0.0
    %831 = vmatpush1.msra.mxu0 0.0
    %832 = vmatprep.subr.mxu0 0.0
    %833 = vmatpush1.msra.mxu0 0.0
    %834 = vmatprep.subr.mxu0 0.0
    %835 = vmatpush1.msra.mxu0 0.0
    %836 = vmatprep.subr.mxu0 0.0
    %837 = vmatpush1.msra.mxu0 0.0
    %838 = vmatprep.subr.mxu0 0.0
    %839 = vmatpush1.msra.mxu0 0.0
    %840 = vmatprep.subr.mxu0 0.0
    %841 = vmatpush1.msra.mxu0 0.0
    %842 = vmatprep.subr.mxu0 0.0
    %843 = vmatpush1.msra.mxu0 0.0
    %844 = vmatprep.subr.mxu0 0.0
    %845 = vmatpush1.msra.mxu0 0.0
    %846 = vmatprep.subr.mxu0 0.0
    %847 = vmatpush1.msra.mxu0 0.0
    %848 = vmatprep.subr.mxu0 0.0
    %849 = vmatpush1.msra.mxu0 0.0
    %850 = vmatprep.subr.mxu0 0.0
    %851 = vmatpush1.msra.mxu0 0.0
    %852 = vmatprep.subr.mxu0 0.0
    %853 = vmatpush1.msra.mxu0 0.0
    %854 = vmatprep.mubr.f32.mxu0 0.0
    %855 = vmatmul.mubr.f32.gmra.mrb[0].mxu0 %v788
    %v856 = vpop.f32.mrb[0].mxu0
    %v857 = vadd.f32 %v34, %v856
    %v858 = vpop.f32.mrb[0].mxu0
    %859 = vdwg.mxu0
    %v860 = vadd.f32 %v787, %v857
    %v861 = vxor.u32 %v860, 2147483648
    %v862 = vmul.f32 %v861, 1.442695
    %v863 = vpow.pop %v862
    %v864 = vadd.f32 %v863, 1.0
    %v865 = vrcp.pop %v864
    %v866 = vmul.f32 1.0, %v865
    %868 = vrot.lane.b32.xlu0 %v857, 64
    %v869 = vpop.permute.xlu0 %868
    %v871 = vmul.f32 %v866, %v869
    %873 = vrot.lane.b32.xlu0 %v871, 64
    %v874 = vpop.permute.xlu0 %873
    %v876 = vadd.f32 %v787, %v874
    %v877 = vtanh.pop %v876
    %v878 = vsub.f32 %v781, %v877
    %880 = vrot.lane.b32.xlu0 %v878, 96
    %v881 = vpop.permute.xlu0 %880
    %v883 = vmul.f32 %v866, %v881
    %885 = vrot.lane.b32.xlu0 %v883, 32
    %v886 = vpop.permute.xlu0 %885
    %v888 = vadd.f32 %v877, %v886
    %890 = vrot.lane.b32.xlu0 %v888, 64
    %v891 = vpop.permute.xlu0 %890
    %893 = vst.msk [vmem:[#allocation2 + $0xe] sm:$0x3] %vm143, %v891
    %894 = vst.msk [vmem:[#allocation6] sm:$0x3] %vm143, %v891
    %v895 = vld [vmem:[#allocation2] sm:$0xff]
    %v896 = vld [vmem:[#allocation2 + $0x8] sm:$0xff]
    %v897 = vld [vmem:[%s1] sm:$0xff]
    %v898 = vld [vmem:[%s1 + $0x8] sm:$0xff]
    %v899 = vld [vmem:[%s1 + $0x10] sm:$0xff]
    %v900 = vld [vmem:[%s1 + $0x18] sm:$0xff]
    %v901 = vld [vmem:[%s2] sm:$0x1]
    %v903 = vlaneseq
    %v904 = vshrl.u32 %v903, 7
    %v905 = vsub.s32 0, %v904
    %v906 = vrot.slane %v901, %v905
    %v909 = vsel %vm36, %v895, 0
    %v912 = vsel %vm36, %v896, 0
    %914 = vmatprep.subr.mxu0 0.0
    %915 = vmatpush1.msra.mxu0 %v897
    %916 = vmatprep.subr.mxu0 0.0
    %917 = vmatpush1.msra.mxu0 %v898
    %918 = vmatprep.subr.mxu0 0.0
    %919 = vmatpush1.msra.mxu0 %v899
    %920 = vmatprep.subr.mxu0 0.0
    %921 = vmatpush1.msra.mxu0 %v900
    %922 = vmatprep.subr.mxu0 0.0
    %923 = vmatpush1.msra.mxu0 0.0
    %924 = vmatprep.subr.mxu0 0.0
    %925 = vmatpush1.msra.mxu0 0.0
    %926 = vmatprep.subr.mxu0 0.0
    %927 = vmatpush1.msra.mxu0 0.0
    %928 = vmatprep.subr.mxu0 0.0
    %929 = vmatpush1.msra.mxu0 0.0
    %930 = vmatprep.subr.mxu0 0.0
    %931 = vmatpush1.msra.mxu0 0.0
    %932 = vmatprep.subr.mxu0 0.0
    %933 = vmatpush1.msra.mxu0 0.0
    %934 = vmatprep.subr.mxu0 0.0
    %935 = vmatpush1.msra.mxu0 0.0
    %936 = vmatprep.subr.mxu0 0.0
    %937 = vmatpush1.msra.mxu0 0.0
    %938 = vmatprep.subr.mxu0 0.0
    %939 = vmatpush1.msra.mxu0 0.0
    %940 = vmatprep.subr.mxu0 0.0
    %941 = vmatpush1.msra.mxu0 0.0
    %942 = vmatprep.subr.mxu0 0.0
    %943 = vmatpush1.msra.mxu0 0.0
    %944 = vmatprep.subr.mxu0 0.0
    %945 = vmatpush1.msra.mxu0 0.0
    %946 = vmatprep.subr.mxu0 0.0
    %947 = vmatpush1.msra.mxu0 0.0
    %948 = vmatprep.subr.mxu0 0.0
    %949 = vmatpush1.msra.mxu0 0.0
    %950 = vmatprep.subr.mxu0 0.0
    %951 = vmatpush1.msra.mxu0 0.0
    %952 = vmatprep.subr.mxu0 0.0
    %953 = vmatpush1.msra.mxu0 0.0
    %954 = vmatprep.subr.mxu0 0.0
    %955 = vmatpush1.msra.mxu0 0.0
    %956 = vmatprep.subr.mxu0 0.0
    %957 = vmatpush1.msra.mxu0 0.0
    %958 = vmatprep.subr.mxu0 0.0
    %959 = vmatpush1.msra.mxu0 0.0
    %960 = vmatprep.subr.mxu0 0.0
    %961 = vmatpush1.msra.mxu0 0.0
    %962 = vmatprep.subr.mxu0 0.0
    %963 = vmatpush1.msra.mxu0 0.0
    %964 = vmatprep.subr.mxu0 0.0
    %965 = vmatpush1.msra.mxu0 0.0
    %966 = vmatprep.subr.mxu0 0.0
    %967 = vmatpush1.msra.mxu0 0.0
    %968 = vmatprep.subr.mxu0 0.0
    %969 = vmatpush1.msra.mxu0 0.0
    %970 = vmatprep.subr.mxu0 0.0
    %971 = vmatpush1.msra.mxu0 0.0
    %972 = vmatprep.subr.mxu0 0.0
    %973 = vmatpush1.msra.mxu0 0.0
    %974 = vmatprep.subr.mxu0 0.0
    %975 = vmatpush1.msra.mxu0 0.0
    %976 = vmatprep.subr.mxu0 0.0
    %977 = vmatpush1.msra.mxu0 0.0
    %978 = vmatprep.mubr.f32.mxu0 0.0
    %979 = vmatmul.mubr.f32.gmra.mrb[0].mxu0 %v909
    %v980 = vpop.f32.mrb[0].mxu0
    %v981 = vadd.f32 %v906, %v980
    %v982 = vpop.f32.mrb[0].mxu0
    %983 = vmatprep.mubr.f32.mxu0 0.0
    %984 = vmatmul.mubr.f32.gmra.mrb[0].mxu0 %v912
    %v985 = vpop.f32.mrb[0].mxu0
    %v986 = vadd.f32 %v906, %v985
    %v987 = vpop.f32.mrb[0].mxu0
    %988 = vdwg.mxu0
    %vm989 = vcmask 785408
    %990 = vst.msk [vmem:[#allocation3] sm:$0xff] %vm989, %v981
    %991 = vst.msk [vmem:[#allocation3 + $0x8] sm:$0xff] %vm989, %v986
    %s992 = scalar_lea.vmem %s3, 32
    %v993 = vld [vmem:[%s992] sm:$0xff]
    %v994 = vld [vmem:[%s992 + $0x8] sm:$0xff]
    %v995 = vld [vmem:[%s992 + $0x10] sm:$0xff]
    %v996 = vld [vmem:[%s992 + $0x18] sm:$0xff]
    %s997 = scalar_lea.vmem %s4, 1
    %v998 = vld [vmem:[%s997] sm:$0x1]
    %v999 = vld [vmem:[#allocation3] sm:$0x3]
    %v1001 = vlaneseq
    %v1002 = vshrl.u32 %v1001, 7
    %v1003 = vsub.s32 0, %v1002
    %v1004 = vrot.slane %v998, %v1003
    %1006 = vmatprep.subr.mxu0 0.0
    %1007 = vmatpush1.msra.mxu0 %v993
    %1008 = vmatprep.subr.mxu0 0.0
    %1009 = vmatpush1.msra.mxu0 %v994
    %1010 = vmatprep.subr.mxu0 0.0
    %1011 = vmatpush1.msra.mxu0 %v995
    %1012 = vmatprep.subr.mxu0 0.0
    %1013 = vmatpush1.msra.mxu0 %v996
    %1014 = vmatprep.subr.mxu0 0.0
    %1015 = vmatpush1.msra.mxu0 0.0
    %1016 = vmatprep.subr.mxu0 0.0
    %1017 = vmatpush1.msra.mxu0 0.0
    %1018 = vmatprep.subr.mxu0 0.0
    %1019 = vmatpush1.msra.mxu0 0.0
    %1020 = vmatprep.subr.mxu0 0.0
    %1021 = vmatpush1.msra.mxu0 0.0
    %1022 = vmatprep.subr.mxu0 0.0
    %1023 = vmatpush1.msra.mxu0 0.0
    %1024 = vmatprep.subr.mxu0 0.0
    %1025 = vmatpush1.msra.mxu0 0.0
    %1026 = vmatprep.subr.mxu0 0.0
    %1027 = vmatpush1.msra.mxu0 0.0
    %1028 = vmatprep.subr.mxu0 0.0
    %1029 = vmatpush1.msra.mxu0 0.0
    %1030 = vmatprep.subr.mxu0 0.0
    %1031 = vmatpush1.msra.mxu0 0.0
    %1032 = vmatprep.subr.mxu0 0.0
    %1033 = vmatpush1.msra.mxu0 0.0
    %1034 = vmatprep.subr.mxu0 0.0
    %1035 = vmatpush1.msra.mxu0 0.0
    %1036 = vmatprep.subr.mxu0 0.0
    %1037 = vmatpush1.msra.mxu0 0.0
    %1038 = vmatprep.subr.mxu0 0.0
    %1039 = vmatpush1.msra.mxu0 0.0
    %1040 = vmatprep.subr.mxu0 0.0
    %1041 = vmatpush1.msra.mxu0 0.0
    %1042 = vmatprep.subr.mxu0 0.0
    %1043 = vmatpush1.msra.mxu0 0.0
    %1044 = vmatprep.subr.mxu0 0.0
    %1045 = vmatpush1.msra.mxu0 0.0
    %1046 = vmatprep.subr.mxu0 0.0
    %1047 = vmatpush1.msra.mxu0 0.0
    %1048 = vmatprep.subr.mxu0 0.0
    %1049 = vmatpush1.msra.mxu0 0.0
    %1050 = vmatprep.subr.mxu0 0.0
    %1051 = vmatpush1.msra.mxu0 0.0
    %1052 = vmatprep.subr.mxu0 0.0
    %1053 = vmatpush1.msra.mxu0 0.0
    %1054 = vmatprep.subr.mxu0 0.0
    %1055 = vmatpush1.msra.mxu0 0.0
    %1056 = vmatprep.subr.mxu0 0.0
    %1057 = vmatpush1.msra.mxu0 0.0
    %1058 = vmatprep.subr.mxu0 0.0
    %1059 = vmatpush1.msra.mxu0 0.0
    %1060 = vmatprep.subr.mxu0 0.0
    %1061 = vmatpush1.msra.mxu0 0.0
    %1062 = vmatprep.subr.mxu0 0.0
    %1063 = vmatpush1.msra.mxu0 0.0
    %1064 = vmatprep.subr.mxu0 0.0
    %1065 = vmatpush1.msra.mxu0 0.0
    %1066 = vmatprep.subr.mxu0 0.0
    %1067 = vmatpush1.msra.mxu0 0.0
    %1068 = vmatprep.subr.mxu0 0.0
    %1069 = vmatpush1.msra.mxu0 0.0
    %1070 = vmatprep.mubr.f32.mxu0 0.0
    %1071 = vmatmul.mubr.f32.gmra.mrb[0].mxu0 %v38
    %v1072 = vpop.f32.mrb[0].mxu0
    %v1073 = vadd.f32 %v1004, %v1072
    %v1074 = vpop.f32.mrb[0].mxu0
    %1075 = vdwg.mxu0
    %v1076 = vadd.f32 %v999, %v1073
    %v1077 = vxor.u32 %v1076, 2147483648
    %v1078 = vmul.f32 %v1077, 1.442695
    %v1079 = vpow.pop %v1078
    %v1080 = vadd.f32 %v1079, 1.0
    %v1081 = vrcp.pop %v1080
    %v1082 = vmul.f32 1.0, %v1081
    %1084 = vrot.lane.b32.xlu0 %v1073, 64
    %v1085 = vpop.permute.xlu0 %1084
    %v1087 = vmul.f32 %v1082, %v1085
    %1089 = vrot.lane.b32.xlu0 %v1087, 64
    %v1090 = vpop.permute.xlu0 %1089
    %v1092 = vadd.f32 %v999, %v1090
    %v1093 = vtanh.pop %v1092
    %v1094 = vsub.f32 0.0, %v1093
    %1096 = vrot.lane.b32.xlu0 %v1094, 96
    %v1097 = vpop.permute.xlu0 %1096
    %v1099 = vmul.f32 %v1082, %v1097
    %1101 = vrot.lane.b32.xlu0 %v1099, 32
    %v1102 = vpop.permute.xlu0 %1101
    %v1104 = vadd.f32 %v1093, %v1102
    %1106 = vrot.lane.b32.xlu0 %v1104, 64
    %v1107 = vpop.permute.xlu0 %1106
    %1109 = vst.msk [vmem:[#allocation4] sm:$0x3] %vm143, %v1107
    %v1110 = vld [vmem:[#allocation3 + $0x2] sm:$0x3]
    %v1111 = vsel %vm36, %v1107, 0
    %1113 = vmatprep.subr.mxu0 0.0
    %1114 = vmatpush1.msra.mxu0 %v993
    %1115 = vmatprep.subr.mxu0 0.0
    %1116 = vmatpush1.msra.mxu0 %v994
    %1117 = vmatprep.subr.mxu0 0.0
    %1118 = vmatpush1.msra.mxu0 %v995
    %1119 = vmatprep.subr.mxu0 0.0
    %1120 = vmatpush1.msra.mxu0 %v996
    %1121 = vmatprep.subr.mxu0 0.0
    %1122 = vmatpush1.msra.mxu0 0.0
    %1123 = vmatprep.subr.mxu0 0.0
    %1124 = vmatpush1.msra.mxu0 0.0
    %1125 = vmatprep.subr.mxu0 0.0
    %1126 = vmatpush1.msra.mxu0 0.0
    %1127 = vmatprep.subr.mxu0 0.0
    %1128 = vmatpush1.msra.mxu0 0.0
    %1129 = vmatprep.subr.mxu0 0.0
    %1130 = vmatpush1.msra.mxu0 0.0
    %1131 = vmatprep.subr.mxu0 0.0
    %1132 = vmatpush1.msra.mxu0 0.0
    %1133 = vmatprep.subr.mxu0 0.0
    %1134 = vmatpush1.msra.mxu0 0.0
    %1135 = vmatprep.subr.mxu0 0.0
    %1136 = vmatpush1.msra.mxu0 0.0
    %1137 = vmatprep.subr.mxu0 0.0
    %1138 = vmatpush1.msra.mxu0 0.0
    %1139 = vmatprep.subr.mxu0 0.0
    %1140 = vmatpush1.msra.mxu0 0.0
    %1141 = vmatprep.subr.mxu0 0.0
    %1142 = vmatpush1.msra.mxu0 0.0
    %1143 = vmatprep.subr.mxu0 0.0
    %1144 = vmatpush1.msra.mxu0 0.0
    %1145 = vmatprep.subr.mxu0 0.0
    %1146 = vmatpush1.msra.mxu0 0.0
    %1147 = vmatprep.subr.mxu0 0.0
    %1148 = vmatpush1.msra.mxu0 0.0
    %1149 = vmatprep.subr.mxu0 0.0
    %1150 = vmatpush1.msra.mxu0 0.0
    %1151 = vmatprep.subr.mxu0 0.0
    %1152 = vmatpush1.msra.mxu0 0.0
    %1153 = vmatprep.subr.mxu0 0.0
    %1154 = vmatpush1.msra.mxu0 0.0
    %1155 = vmatprep.subr.mxu0 0.0
    %1156 = vmatpush1.msra.mxu0 0.0
    %1157 = vmatprep.subr.mxu0 0.0
    %1158 = vmatpush1.msra.mxu0 0.0
    %1159 = vmatprep.subr.mxu0 0.0
    %1160 = vmatpush1.msra.mxu0 0.0
    %1161 = vmatprep.subr.mxu0 0.0
    %1162 = vmatpush1.msra.mxu0 0.0
    %1163 = vmatprep.subr.mxu0 0.0
    %1164 = vmatpush1.msra.mxu0 0.0
    %1165 = vmatprep.subr.mxu0 0.0
    %1166 = vmatpush1.msra.mxu0 0.0
    %1167 = vmatprep.subr.mxu0 0.0
    %1168 = vmatpush1.msra.mxu0 0.0
    %1169 = vmatprep.subr.mxu0 0.0
    %1170 = vmatpush1.msra.mxu0 0.0
    %1171 = vmatprep.subr.mxu0 0.0
    %1172 = vmatpush1.msra.mxu0 0.0
    %1173 = vmatprep.subr.mxu0 0.0
    %1174 = vmatpush1.msra.mxu0 0.0
    %1175 = vmatprep.subr.mxu0 0.0
    %1176 = vmatpush1.msra.mxu0 0.0
    %1177 = vmatprep.mubr.f32.mxu0 0.0
    %1178 = vmatmul.mubr.f32.gmra.mrb[0].mxu0 %v1111
    %v1179 = vpop.f32.mrb[0].mxu0
    %v1180 = vadd.f32 %v1004, %v1179
    %v1181 = vpop.f32.mrb[0].mxu0
    %1182 = vdwg.mxu0
    %v1183 = vadd.f32 %v1110, %v1180
    %v1184 = vxor.u32 %v1183, 2147483648
    %v1185 = vmul.f32 %v1184, 1.442695
    %v1186 = vpow.pop %v1185
    %v1187 = vadd.f32 %v1186, 1.0
    %v1188 = vrcp.pop %v1187
    %v1189 = vmul.f32 1.0, %v1188
    %1191 = vrot.lane.b32.xlu0 %v1180, 64
    %v1192 = vpop.permute.xlu0 %1191
    %v1194 = vmul.f32 %v1189, %v1192
    %1196 = vrot.lane.b32.xlu0 %v1194, 64
    %v1197 = vpop.permute.xlu0 %1196
    %v1199 = vadd.f32 %v1110, %v1197
    %v1200 = vtanh.pop %v1199
    %v1201 = vsub.f32 %v1104, %v1200
    %1203 = vrot.lane.b32.xlu0 %v1201, 96
    %v1204 = vpop.permute.xlu0 %1203
    %v1206 = vmul.f32 %v1189, %v1204
    %1208 = vrot.lane.b32.xlu0 %v1206, 32
    %v1209 = vpop.permute.xlu0 %1208
    %v1211 = vadd.f32 %v1200, %v1209
    %1213 = vrot.lane.b32.xlu0 %v1211, 64
    %v1214 = vpop.permute.xlu0 %1213
    %1216 = vst.msk [vmem:[#allocation4 + $0x2] sm:$0x3] %vm143, %v1214
    %v1217 = vld [vmem:[#allocation3 + $0x4] sm:$0x3]
    %v1218 = vsel %vm36, %v1214, 0
    %1220 = vmatprep.subr.mxu0 0.0
    %1221 = vmatpush1.msra.mxu0 %v993
    %1222 = vmatprep.subr.mxu0 0.0
    %1223 = vmatpush1.msra.mxu0 %v994
    %1224 = vmatprep.subr.mxu0 0.0
    %1225 = vmatpush1.msra.mxu0 %v995
    %1226 = vmatprep.subr.mxu0 0.0
    %1227 = vmatpush1.msra.mxu0 %v996
    %1228 = vmatprep.subr.mxu0 0.0
    %1229 = vmatpush1.msra.mxu0 0.0
    %1230 = vmatprep.subr.mxu0 0.0
    %1231 = vmatpush1.msra.mxu0 0.0
    %1232 = vmatprep.subr.mxu0 0.0
    %1233 = vmatpush1.msra.mxu0 0.0
    %1234 = vmatprep.subr.mxu0 0.0
    %1235 = vmatpush1.msra.mxu0 0.0
    %1236 = vmatprep.subr.mxu0 0.0
    %1237 = vmatpush1.msra.mxu0 0.0
    %1238 = vmatprep.subr.mxu0 0.0
    %1239 = vmatpush1.msra.mxu0 0.0
    %1240 = vmatprep.subr.mxu0 0.0
    %1241 = vmatpush1.msra.mxu0 0.0
    %1242 = vmatprep.subr.mxu0 0.0
    %1243 = vmatpush1.msra.mxu0 0.0
    %1244 = vmatprep.subr.mxu0 0.0
    %1245 = vmatpush1.msra.mxu0 0.0
    %1246 = vmatprep.subr.mxu0 0.0
    %1247 = vmatpush1.msra.mxu0 0.0
    %1248 = vmatprep.subr.mxu0 0.0
    %1249 = vmatpush1.msra.mxu0 0.0
    %1250 = vmatprep.subr.mxu0 0.0
    %1251 = vmatpush1.msra.mxu0 0.0
    %1252 = vmatprep.subr.mxu0 0.0
    %1253 = vmatpush1.msra.mxu0 0.0
    %1254 = vmatprep.subr.mxu0 0.0
    %1255 = vmatpush1.msra.mxu0 0.0
    %1256 = vmatprep.subr.mxu0 0.0
    %1257 = vmatpush1.msra.mxu0 0.0
    %1258 = vmatprep.subr.mxu0 0.0
    %1259 = vmatpush1.msra.mxu0 0.0
    %1260 = vmatprep.subr.mxu0 0.0
    %1261 = vmatpush1.msra.mxu0 0.0
    %1262 = vmatprep.subr.mxu0 0.0
    %1263 = vmatpush1.msra.mxu0 0.0
    %1264 = vmatprep.subr.mxu0 0.0
    %1265 = vmatpush1.msra.mxu0 0.0
    %1266 = vmatprep.subr.mxu0 0.0
    %1267 = vmatpush1.msra.mxu0 0.0
    %1268 = vmatprep.subr.mxu0 0.0
    %1269 = vmatpush1.msra.mxu0 0.0
    %1270 = vmatprep.subr.mxu0 0.0
    %1271 = vmatpush1.msra.mxu0 0.0
    %1272 = vmatprep.subr.mxu0 0.0
    %1273 = vmatpush1.msra.mxu0 0.0
    %1274 = vmatprep.subr.mxu0 0.0
    %1275 = vmatpush1.msra.mxu0 0.0
    %1276 = vmatprep.subr.mxu0 0.0
    %1277 = vmatpush1.msra.mxu0 0.0
    %1278 = vmatprep.subr.mxu0 0.0
    %1279 = vmatpush1.msra.mxu0 0.0
    %1280 = vmatprep.subr.mxu0 0.0
    %1281 = vmatpush1.msra.mxu0 0.0
    %1282 = vmatprep.subr.mxu0 0.0
    %1283 = vmatpush1.msra.mxu0 0.0
    %1284 = vmatprep.mubr.f32.mxu0 0.0
    %1285 = vmatmul.mubr.f32.gmra.mrb[0].mxu0 %v1218
    %v1286 = vpop.f32.mrb[0].mxu0
    %v1287 = vadd.f32 %v1004, %v1286
    %v1288 = vpop.f32.mrb[0].mxu0
    %1289 = vdwg.mxu0
    %v1290 = vadd.f32 %v1217, %v1287
    %v1291 = vxor.u32 %v1290, 2147483648
    %v1292 = vmul.f32 %v1291, 1.442695
    %v1293 = vpow.pop %v1292
    %v1294 = vadd.f32 %v1293, 1.0
    %v1295 = vrcp.pop %v1294
    %v1296 = vmul.f32 1.0, %v1295
    %1298 = vrot.lane.b32.xlu0 %v1287, 64
    %v1299 = vpop.permute.xlu0 %1298
    %v1301 = vmul.f32 %v1296, %v1299
    %1303 = vrot.lane.b32.xlu0 %v1301, 64
    %v1304 = vpop.permute.xlu0 %1303
    %v1306 = vadd.f32 %v1217, %v1304
    %v1307 = vtanh.pop %v1306
    %v1308 = vsub.f32 %v1211, %v1307
    %1310 = vrot.lane.b32.xlu0 %v1308, 96
    %v1311 = vpop.permute.xlu0 %1310
    %v1313 = vmul.f32 %v1296, %v1311
    %1315 = vrot.lane.b32.xlu0 %v1313, 32
    %v1316 = vpop.permute.xlu0 %1315
    %v1318 = vadd.f32 %v1307, %v1316
    %1320 = vrot.lane.b32.xlu0 %v1318, 64
    %v1321 = vpop.permute.xlu0 %1320
    %1323 = vst.msk [vmem:[#allocation4 + $0x4] sm:$0x3] %vm143, %v1321
    %v1324 = vld [vmem:[#allocation3 + $0x6] sm:$0x3]
    %v1325 = vsel %vm36, %v1321, 0
    %1327 = vmatprep.subr.mxu0 0.0
    %1328 = vmatpush1.msra.mxu0 %v993
    %1329 = vmatprep.subr.mxu0 0.0
    %1330 = vmatpush1.msra.mxu0 %v994
    %1331 = vmatprep.subr.mxu0 0.0
    %1332 = vmatpush1.msra.mxu0 %v995
    %1333 = vmatprep.subr.mxu0 0.0
    %1334 = vmatpush1.msra.mxu0 %v996
    %1335 = vmatprep.subr.mxu0 0.0
    %1336 = vmatpush1.msra.mxu0 0.0
    %1337 = vmatprep.subr.mxu0 0.0
    %1338 = vmatpush1.msra.mxu0 0.0
    %1339 = vmatprep.subr.mxu0 0.0
    %1340 = vmatpush1.msra.mxu0 0.0
    %1341 = vmatprep.subr.mxu0 0.0
    %1342 = vmatpush1.msra.mxu0 0.0
    %1343 = vmatprep.subr.mxu0 0.0
    %1344 = vmatpush1.msra.mxu0 0.0
    %1345 = vmatprep.subr.mxu0 0.0
    %1346 = vmatpush1.msra.mxu0 0.0
    %1347 = vmatprep.subr.mxu0 0.0
    %1348 = vmatpush1.msra.mxu0 0.0
    %1349 = vmatprep.subr.mxu0 0.0
    %1350 = vmatpush1.msra.mxu0 0.0
    %1351 = vmatprep.subr.mxu0 0.0
    %1352 = vmatpush1.msra.mxu0 0.0
    %1353 = vmatprep.subr.mxu0 0.0
    %1354 = vmatpush1.msra.mxu0 0.0
    %1355 = vmatprep.subr.mxu0 0.0
    %1356 = vmatpush1.msra.mxu0 0.0
    %1357 = vmatprep.subr.mxu0 0.0
    %1358 = vmatpush1.msra.mxu0 0.0
    %1359 = vmatprep.subr.mxu0 0.0
    %1360 = vmatpush1.msra.mxu0 0.0
    %1361 = vmatprep.subr.mxu0 0.0
    %1362 = vmatpush1.msra.mxu0 0.0
    %1363 = vmatprep.subr.mxu0 0.0
    %1364 = vmatpush1.msra.mxu0 0.0
    %1365 = vmatprep.subr.mxu0 0.0
    %1366 = vmatpush1.msra.mxu0 0.0
    %1367 = vmatprep.subr.mxu0 0.0
    %1368 = vmatpush1.msra.mxu0 0.0
    %1369 = vmatprep.subr.mxu0 0.0
    %1370 = vmatpush1.msra.mxu0 0.0
    %1371 = vmatprep.subr.mxu0 0.0
    %1372 = vmatpush1.msra.mxu0 0.0
    %1373 = vmatprep.subr.mxu0 0.0
    %1374 = vmatpush1.msra.mxu0 0.0
    %1375 = vmatprep.subr.mxu0 0.0
    %1376 = vmatpush1.msra.mxu0 0.0
    %1377 = vmatprep.subr.mxu0 0.0
    %1378 = vmatpush1.msra.mxu0 0.0
    %1379 = vmatprep.subr.mxu0 0.0
    %1380 = vmatpush1.msra.mxu0 0.0
    %1381 = vmatprep.subr.mxu0 0.0
    %1382 = vmatpush1.msra.mxu0 0.0
    %1383 = vmatprep.subr.mxu0 0.0
    %1384 = vmatpush1.msra.mxu0 0.0
    %1385 = vmatprep.subr.mxu0 0.0
    %1386 = vmatpush1.msra.mxu0 0.0
    %1387 = vmatprep.subr.mxu0 0.0
    %1388 = vmatpush1.msra.mxu0 0.0
    %1389 = vmatprep.subr.mxu0 0.0
    %1390 = vmatpush1.msra.mxu0 0.0
    %1391 = vmatprep.mubr.f32.mxu0 0.0
    %1392 = vmatmul.mubr.f32.gmra.mrb[0].mxu0 %v1325
    %v1393 = vpop.f32.mrb[0].mxu0
    %v1394 = vadd.f32 %v1004, %v1393
    %v1395 = vpop.f32.mrb[0].mxu0
    %1396 = vdwg.mxu0
    %v1397 = vadd.f32 %v1324, %v1394
    %v1398 = vxor.u32 %v1397, 2147483648
    %v1399 = vmul.f32 %v1398, 1.442695
    %v1400 = vpow.pop %v1399
    %v1401 = vadd.f32 %v1400, 1.0
    %v1402 = vrcp.pop %v1401
    %v1403 = vmul.f32 1.0, %v1402
    %1405 = vrot.lane.b32.xlu0 %v1394, 64
    %v1406 = vpop.permute.xlu0 %1405
    %v1408 = vmul.f32 %v1403, %v1406
    %1410 = vrot.lane.b32.xlu0 %v1408, 64
    %v1411 = vpop.permute.xlu0 %1410
    %v1413 = vadd.f32 %v1324, %v1411
    %v1414 = vtanh.pop %v1413
    %v1415 = vsub.f32 %v1318, %v1414
    %1417 = vrot.lane.b32.xlu0 %v1415, 96
    %v1418 = vpop.permute.xlu0 %1417
    %v1420 = vmul.f32 %v1403, %v1418
    %1422 = vrot.lane.b32.xlu0 %v1420, 32
    %v1423 = vpop.permute.xlu0 %1422
    %v1425 = vadd.f32 %v1414, %v1423
    %1427 = vrot.lane.b32.xlu0 %v1425, 64
    %v1428 = vpop.permute.xlu0 %1427
    %1430 = vst.msk [vmem:[#allocation4 + $0x6] sm:$0x3] %vm143, %v1428
    %v1431 = vld [vmem:[#allocation3 + $0x8] sm:$0x3]
    %v1432 = vsel %vm36, %v1428, 0
    %1434 = vmatprep.subr.mxu0 0.0
    %1435 = vmatpush1.msra.mxu0 %v993
    %1436 = vmatprep.subr.mxu0 0.0
    %1437 = vmatpush1.msra.mxu0 %v994
    %1438 = vmatprep.subr.mxu0 0.0
    %1439 = vmatpush1.msra.mxu0 %v995
    %1440 = vmatprep.subr.mxu0 0.0
    %1441 = vmatpush1.msra.mxu0 %v996
    %1442 = vmatprep.subr.mxu0 0.0
    %1443 = vmatpush1.msra.mxu0 0.0
    %1444 = vmatprep.subr.mxu0 0.0
    %1445 = vmatpush1.msra.mxu0 0.0
    %1446 = vmatprep.subr.mxu0 0.0
    %1447 = vmatpush1.msra.mxu0 0.0
    %1448 = vmatprep.subr.mxu0 0.0
    %1449 = vmatpush1.msra.mxu0 0.0
    %1450 = vmatprep.subr.mxu0 0.0
    %1451 = vmatpush1.msra.mxu0 0.0
    %1452 = vmatprep.subr.mxu0 0.0
    %1453 = vmatpush1.msra.mxu0 0.0
    %1454 = vmatprep.subr.mxu0 0.0
    %1455 = vmatpush1.msra.mxu0 0.0
    %1456 = vmatprep.subr.mxu0 0.0
    %1457 = vmatpush1.msra.mxu0 0.0
    %1458 = vmatprep.subr.mxu0 0.0
    %1459 = vmatpush1.msra.mxu0 0.0
    %1460 = vmatprep.subr.mxu0 0.0
    %1461 = vmatpush1.msra.mxu0 0.0
    %1462 = vmatprep.subr.mxu0 0.0
    %1463 = vmatpush1.msra.mxu0 0.0
    %1464 = vmatprep.subr.mxu0 0.0
    %1465 = vmatpush1.msra.mxu0 0.0
    %1466 = vmatprep.subr.mxu0 0.0
    %1467 = vmatpush1.msra.mxu0 0.0
    %1468 = vmatprep.subr.mxu0 0.0
    %1469 = vmatpush1.msra.mxu0 0.0
    %1470 = vmatprep.subr.mxu0 0.0
    %1471 = vmatpush1.msra.mxu0 0.0
    %1472 = vmatprep.subr.mxu0 0.0
    %1473 = vmatpush1.msra.mxu0 0.0
    %1474 = vmatprep.subr.mxu0 0.0
    %1475 = vmatpush1.msra.mxu0 0.0
    %1476 = vmatprep.subr.mxu0 0.0
    %1477 = vmatpush1.msra.mxu0 0.0
    %1478 = vmatprep.subr.mxu0 0.0
    %1479 = vmatpush1.msra.mxu0 0.0
    %1480 = vmatprep.subr.mxu0 0.0
    %1481 = vmatpush1.msra.mxu0 0.0
    %1482 = vmatprep.subr.mxu0 0.0
    %1483 = vmatpush1.msra.mxu0 0.0
    %1484 = vmatprep.subr.mxu0 0.0
    %1485 = vmatpush1.msra.mxu0 0.0
    %1486 = vmatprep.subr.mxu0 0.0
    %1487 = vmatpush1.msra.mxu0 0.0
    %1488 = vmatprep.subr.mxu0 0.0
    %1489 = vmatpush1.msra.mxu0 0.0
    %1490 = vmatprep.subr.mxu0 0.0
    %1491 = vmatpush1.msra.mxu0 0.0
    %1492 = vmatprep.subr.mxu0 0.0
    %1493 = vmatpush1.msra.mxu0 0.0
    %1494 = vmatprep.subr.mxu0 0.0
    %1495 = vmatpush1.msra.mxu0 0.0
    %1496 = vmatprep.subr.mxu0 0.0
    %1497 = vmatpush1.msra.mxu0 0.0
    %1498 = vmatprep.mubr.f32.mxu0 0.0
    %1499 = vmatmul.mubr.f32.gmra.mrb[0].mxu0 %v1432
    %v1500 = vpop.f32.mrb[0].mxu0
    %v1501 = vadd.f32 %v1004, %v1500
    %v1502 = vpop.f32.mrb[0].mxu0
    %1503 = vdwg.mxu0
    %v1504 = vadd.f32 %v1431, %v1501
    %v1505 = vxor.u32 %v1504, 2147483648
    %v1506 = vmul.f32 %v1505, 1.442695
    %v1507 = vpow.pop %v1506
    %v1508 = vadd.f32 %v1507, 1.0
    %v1509 = vrcp.pop %v1508
    %v1510 = vmul.f32 1.0, %v1509
    %1512 = vrot.lane.b32.xlu0 %v1501, 64
    %v1513 = vpop.permute.xlu0 %1512
    %v1515 = vmul.f32 %v1510, %v1513
    %1517 = vrot.lane.b32.xlu0 %v1515, 64
    %v1518 = vpop.permute.xlu0 %1517
    %v1520 = vadd.f32 %v1431, %v1518
    %v1521 = vtanh.pop %v1520
    %v1522 = vsub.f32 %v1425, %v1521
    %1524 = vrot.lane.b32.xlu0 %v1522, 96
    %v1525 = vpop.permute.xlu0 %1524
    %v1527 = vmul.f32 %v1510, %v1525
    %1529 = vrot.lane.b32.xlu0 %v1527, 32
    %v1530 = vpop.permute.xlu0 %1529
    %v1532 = vadd.f32 %v1521, %v1530
    %1534 = vrot.lane.b32.xlu0 %v1532, 64
    %v1535 = vpop.permute.xlu0 %1534
    %1537 = vst.msk [vmem:[#allocation4 + $0x8] sm:$0x3] %vm143, %v1535
    %v1538 = vld [vmem:[#allocation3 + $0xa] sm:$0x3]
    %v1539 = vsel %vm36, %v1535, 0
    %1541 = vmatprep.subr.mxu0 0.0
    %1542 = vmatpush1.msra.mxu0 %v993
    %1543 = vmatprep.subr.mxu0 0.0
    %1544 = vmatpush1.msra.mxu0 %v994
    %1545 = vmatprep.subr.mxu0 0.0
    %1546 = vmatpush1.msra.mxu0 %v995
    %1547 = vmatprep.subr.mxu0 0.0
    %1548 = vmatpush1.msra.mxu0 %v996
    %1549 = vmatprep.subr.mxu0 0.0
    %1550 = vmatpush1.msra.mxu0 0.0
    %1551 = vmatprep.subr.mxu0 0.0
    %1552 = vmatpush1.msra.mxu0 0.0
    %1553 = vmatprep.subr.mxu0 0.0
    %1554 = vmatpush1.msra.mxu0 0.0
    %1555 = vmatprep.subr.mxu0 0.0
    %1556 = vmatpush1.msra.mxu0 0.0
    %1557 = vmatprep.subr.mxu0 0.0
    %1558 = vmatpush1.msra.mxu0 0.0
    %1559 = vmatprep.subr.mxu0 0.0
    %1560 = vmatpush1.msra.mxu0 0.0
    %1561 = vmatprep.subr.mxu0 0.0
    %1562 = vmatpush1.msra.mxu0 0.0
    %1563 = vmatprep.subr.mxu0 0.0
    %1564 = vmatpush1.msra.mxu0 0.0
    %1565 = vmatprep.subr.mxu0 0.0
    %1566 = vmatpush1.msra.mxu0 0.0
    %1567 = vmatprep.subr.mxu0 0.0
    %1568 = vmatpush1.msra.mxu0 0.0
    %1569 = vmatprep.subr.mxu0 0.0
    %1570 = vmatpush1.msra.mxu0 0.0
    %1571 = vmatprep.subr.mxu0 0.0
    %1572 = vmatpush1.msra.mxu0 0.0
    %1573 = vmatprep.subr.mxu0 0.0
    %1574 = vmatpush1.msra.mxu0 0.0
    %1575 = vmatprep.subr.mxu0 0.0
    %1576 = vmatpush1.msra.mxu0 0.0
    %1577 = vmatprep.subr.mxu0 0.0
    %1578 = vmatpush1.msra.mxu0 0.0
    %1579 = vmatprep.subr.mxu0 0.0
    %1580 = vmatpush1.msra.mxu0 0.0
    %1581 = vmatprep.subr.mxu0 0.0
    %1582 = vmatpush1.msra.mxu0 0.0
    %1583 = vmatprep.subr.mxu0 0.0
    %1584 = vmatpush1.msra.mxu0 0.0
    %1585 = vmatprep.subr.mxu0 0.0
    %1586 = vmatpush1.msra.mxu0 0.0
    %1587 = vmatprep.subr.mxu0 0.0
    %1588 = vmatpush1.msra.mxu0 0.0
    %1589 = vmatprep.subr.mxu0 0.0
    %1590 = vmatpush1.msra.mxu0 0.0
    %1591 = vmatprep.subr.mxu0 0.0
    %1592 = vmatpush1.msra.mxu0 0.0
    %1593 = vmatprep.subr.mxu0 0.0
    %1594 = vmatpush1.msra.mxu0 0.0
    %1595 = vmatprep.subr.mxu0 0.0
    %1596 = vmatpush1.msra.mxu0 0.0
    %1597 = vmatprep.subr.mxu0 0.0
    %1598 = vmatpush1.msra.mxu0 0.0
    %1599 = vmatprep.subr.mxu0 0.0
    %1600 = vmatpush1.msra.mxu0 0.0
    %1601 = vmatprep.subr.mxu0 0.0
    %1602 = vmatpush1.msra.mxu0 0.0
    %1603 = vmatprep.subr.mxu0 0.0
    %1604 = vmatpush1.msra.mxu0 0.0
    %1605 = vmatprep.mubr.f32.mxu0 0.0
    %1606 = vmatmul.mubr.f32.gmra.mrb[0].mxu0 %v1539
    %v1607 = vpop.f32.mrb[0].mxu0
    %v1608 = vadd.f32 %v1004, %v1607
    %v1609 = vpop.f32.mrb[0].mxu0
    %1610 = vdwg.mxu0
    %v1611 = vadd.f32 %v1538, %v1608
    %v1612 = vxor.u32 %v1611, 2147483648
    %v1613 = vmul.f32 %v1612, 1.442695
    %v1614 = vpow.pop %v1613
    %v1615 = vadd.f32 %v1614, 1.0
    %v1616 = vrcp.pop %v1615
    %v1617 = vmul.f32 1.0, %v1616
    %1619 = vrot.lane.b32.xlu0 %v1608, 64
    %v1620 = vpop.permute.xlu0 %1619
    %v1622 = vmul.f32 %v1617, %v1620
    %1624 = vrot.lane.b32.xlu0 %v1622, 64
    %v1625 = vpop.permute.xlu0 %1624
    %v1627 = vadd.f32 %v1538, %v1625
    %v1628 = vtanh.pop %v1627
    %v1629 = vsub.f32 %v1532, %v1628
    %1631 = vrot.lane.b32.xlu0 %v1629, 96
    %v1632 = vpop.permute.xlu0 %1631
    %v1634 = vmul.f32 %v1617, %v1632
    %1636 = vrot.lane.b32.xlu0 %v1634, 32
    %v1637 = vpop.permute.xlu0 %1636
    %v1639 = vadd.f32 %v1628, %v1637
    %1641 = vrot.lane.b32.xlu0 %v1639, 64
    %v1642 = vpop.permute.xlu0 %1641
    %1644 = vst.msk [vmem:[#allocation4 + $0xa] sm:$0x3] %vm143, %v1642
    %v1645 = vld [vmem:[#allocation3 + $0xc] sm:$0x3]
    %v1646 = vsel %vm36, %v1642, 0
    %1648 = vmatprep.subr.mxu0 0.0
    %1649 = vmatpush1.msra.mxu0 %v993
    %1650 = vmatprep.subr.mxu0 0.0
    %1651 = vmatpush1.msra.mxu0 %v994
    %1652 = vmatprep.subr.mxu0 0.0
    %1653 = vmatpush1.msra.mxu0 %v995
    %1654 = vmatprep.subr.mxu0 0.0
    %1655 = vmatpush1.msra.mxu0 %v996
    %1656 = vmatprep.subr.mxu0 0.0
    %1657 = vmatpush1.msra.mxu0 0.0
    %1658 = vmatprep.subr.mxu0 0.0
    %1659 = vmatpush1.msra.mxu0 0.0
    %1660 = vmatprep.subr.mxu0 0.0
    %1661 = vmatpush1.msra.mxu0 0.0
    %1662 = vmatprep.subr.mxu0 0.0
    %1663 = vmatpush1.msra.mxu0 0.0
    %1664 = vmatprep.subr.mxu0 0.0
    %1665 = vmatpush1.msra.mxu0 0.0
    %1666 = vmatprep.subr.mxu0 0.0
    %1667 = vmatpush1.msra.mxu0 0.0
    %1668 = vmatprep.subr.mxu0 0.0
    %1669 = vmatpush1.msra.mxu0 0.0
    %1670 = vmatprep.subr.mxu0 0.0
    %1671 = vmatpush1.msra.mxu0 0.0
    %1672 = vmatprep.subr.mxu0 0.0
    %1673 = vmatpush1.msra.mxu0 0.0
    %1674 = vmatprep.subr.mxu0 0.0
    %1675 = vmatpush1.msra.mxu0 0.0
    %1676 = vmatprep.subr.mxu0 0.0
    %1677 = vmatpush1.msra.mxu0 0.0
    %1678 = vmatprep.subr.mxu0 0.0
    %1679 = vmatpush1.msra.mxu0 0.0
    %1680 = vmatprep.subr.mxu0 0.0
    %1681 = vmatpush1.msra.mxu0 0.0
    %1682 = vmatprep.subr.mxu0 0.0
    %1683 = vmatpush1.msra.mxu0 0.0
    %1684 = vmatprep.subr.mxu0 0.0
    %1685 = vmatpush1.msra.mxu0 0.0
    %1686 = vmatprep.subr.mxu0 0.0
    %1687 = vmatpush1.msra.mxu0 0.0
    %1688 = vmatprep.subr.mxu0 0.0
    %1689 = vmatpush1.msra.mxu0 0.0
    %1690 = vmatprep.subr.mxu0 0.0
    %1691 = vmatpush1.msra.mxu0 0.0
    %1692 = vmatprep.subr.mxu0 0.0
    %1693 = vmatpush1.msra.mxu0 0.0
    %1694 = vmatprep.subr.mxu0 0.0
    %1695 = vmatpush1.msra.mxu0 0.0
    %1696 = vmatprep.subr.mxu0 0.0
    %1697 = vmatpush1.msra.mxu0 0.0
    %1698 = vmatprep.subr.mxu0 0.0
    %1699 = vmatpush1.msra.mxu0 0.0
    %1700 = vmatprep.subr.mxu0 0.0
    %1701 = vmatpush1.msra.mxu0 0.0
    %1702 = vmatprep.subr.mxu0 0.0
    %1703 = vmatpush1.msra.mxu0 0.0
    %1704 = vmatprep.subr.mxu0 0.0
    %1705 = vmatpush1.msra.mxu0 0.0
    %1706 = vmatprep.subr.mxu0 0.0
    %1707 = vmatpush1.msra.mxu0 0.0
    %1708 = vmatprep.subr.mxu0 0.0
    %1709 = vmatpush1.msra.mxu0 0.0
    %1710 = vmatprep.subr.mxu0 0.0
    %1711 = vmatpush1.msra.mxu0 0.0
    %1712 = vmatprep.mubr.f32.mxu0 0.0
    %1713 = vmatmul.mubr.f32.gmra.mrb[0].mxu0 %v1646
    %v1714 = vpop.f32.mrb[0].mxu0
    %v1715 = vadd.f32 %v1004, %v1714
    %v1716 = vpop.f32.mrb[0].mxu0
    %1717 = vdwg.mxu0
    %v1718 = vadd.f32 %v1645, %v1715
    %v1719 = vxor.u32 %v1718, 2147483648
    %v1720 = vmul.f32 %v1719, 1.442695
    %v1721 = vpow.pop %v1720
    %v1722 = vadd.f32 %v1721, 1.0
    %v1723 = vrcp.pop %v1722
    %v1724 = vmul.f32 1.0, %v1723
    %1726 = vrot.lane.b32.xlu0 %v1715, 64
    %v1727 = vpop.permute.xlu0 %1726
    %v1729 = vmul.f32 %v1724, %v1727
    %1731 = vrot.lane.b32.xlu0 %v1729, 64
    %v1732 = vpop.permute.xlu0 %1731
    %v1734 = vadd.f32 %v1645, %v1732
    %v1735 = vtanh.pop %v1734
    %v1736 = vsub.f32 %v1639, %v1735
    %1738 = vrot.lane.b32.xlu0 %v1736, 96
    %v1739 = vpop.permute.xlu0 %1738
    %v1741 = vmul.f32 %v1724, %v1739
    %1743 = vrot.lane.b32.xlu0 %v1741, 32
    %v1744 = vpop.permute.xlu0 %1743
    %v1746 = vadd.f32 %v1735, %v1744
    %1748 = vrot.lane.b32.xlu0 %v1746, 64
    %v1749 = vpop.permute.xlu0 %1748
    %1751 = vst.msk [vmem:[#allocation4 + $0xc] sm:$0x3] %vm143, %v1749
    %v1752 = vld [vmem:[#allocation3 + $0xe] sm:$0x3]
    %v1753 = vsel %vm36, %v1749, 0
    %1755 = vmatprep.subr.mxu0 0.0
    %1756 = vmatpush1.msra.mxu0 %v993
    %1757 = vmatprep.subr.mxu0 0.0
    %1758 = vmatpush1.msra.mxu0 %v994
    %1759 = vmatprep.subr.mxu0 0.0
    %1760 = vmatpush1.msra.mxu0 %v995
    %1761 = vmatprep.subr.mxu0 0.0
    %1762 = vmatpush1.msra.mxu0 %v996
    %1763 = vmatprep.subr.mxu0 0.0
    %1764 = vmatpush1.msra.mxu0 0.0
    %1765 = vmatprep.subr.mxu0 0.0
    %1766 = vmatpush1.msra.mxu0 0.0
    %1767 = vmatprep.subr.mxu0 0.0
    %1768 = vmatpush1.msra.mxu0 0.0
    %1769 = vmatprep.subr.mxu0 0.0
    %1770 = vmatpush1.msra.mxu0 0.0
    %1771 = vmatprep.subr.mxu0 0.0
    %1772 = vmatpush1.msra.mxu0 0.0
    %1773 = vmatprep.subr.mxu0 0.0
    %1774 = vmatpush1.msra.mxu0 0.0
    %1775 = vmatprep.subr.mxu0 0.0
    %1776 = vmatpush1.msra.mxu0 0.0
    %1777 = vmatprep.subr.mxu0 0.0
    %1778 = vmatpush1.msra.mxu0 0.0
    %1779 = vmatprep.subr.mxu0 0.0
    %1780 = vmatpush1.msra.mxu0 0.0
    %1781 = vmatprep.subr.mxu0 0.0
    %1782 = vmatpush1.msra.mxu0 0.0
    %1783 = vmatprep.subr.mxu0 0.0
    %1784 = vmatpush1.msra.mxu0 0.0
    %1785 = vmatprep.subr.mxu0 0.0
    %1786 = vmatpush1.msra.mxu0 0.0
    %1787 = vmatprep.subr.mxu0 0.0
    %1788 = vmatpush1.msra.mxu0 0.0
    %1789 = vmatprep.subr.mxu0 0.0
    %1790 = vmatpush1.msra.mxu0 0.0
    %1791 = vmatprep.subr.mxu0 0.0
    %1792 = vmatpush1.msra.mxu0 0.0
    %1793 = vmatprep.subr.mxu0 0.0
    %1794 = vmatpush1.msra.mxu0 0.0
    %1795 = vmatprep.subr.mxu0 0.0
    %1796 = vmatpush1.msra.mxu0 0.0
    %1797 = vmatprep.subr.mxu0 0.0
    %1798 = vmatpush1.msra.mxu0 0.0
    %1799 = vmatprep.subr.mxu0 0.0
    %1800 = vmatpush1.msra.mxu0 0.0
    %1801 = vmatprep.subr.mxu0 0.0
    %1802 = vmatpush1.msra.mxu0 0.0
    %1803 = vmatprep.subr.mxu0 0.0
    %1804 = vmatpush1.msra.mxu0 0.0
    %1805 = vmatprep.subr.mxu0 0.0
    %1806 = vmatpush1.msra.mxu0 0.0
    %1807 = vmatprep.subr.mxu0 0.0
    %1808 = vmatpush1.msra.mxu0 0.0
    %1809 = vmatprep.subr.mxu0 0.0
    %1810 = vmatpush1.msra.mxu0 0.0
    %1811 = vmatprep.subr.mxu0 0.0
    %1812 = vmatpush1.msra.mxu0 0.0
    %1813 = vmatprep.subr.mxu0 0.0
    %1814 = vmatpush1.msra.mxu0 0.0
    %1815 = vmatprep.subr.mxu0 0.0
    %1816 = vmatpush1.msra.mxu0 0.0
    %1817 = vmatprep.subr.mxu0 0.0
    %1818 = vmatpush1.msra.mxu0 0.0
    %1819 = vmatprep.mubr.f32.mxu0 0.0
    %1820 = vmatmul.mubr.f32.gmra.mrb[0].mxu0 %v1753
    %v1821 = vpop.f32.mrb[0].mxu0
    %v1822 = vadd.f32 %v1004, %v1821
    %v1823 = vpop.f32.mrb[0].mxu0
    %1824 = vdwg.mxu0
    %v1825 = vadd.f32 %v1752, %v1822
    %v1826 = vxor.u32 %v1825, 2147483648
    %v1827 = vmul.f32 %v1826, 1.442695
    %v1828 = vpow.pop %v1827
    %v1829 = vadd.f32 %v1828, 1.0
    %v1830 = vrcp.pop %v1829
    %v1831 = vmul.f32 1.0, %v1830
    %1833 = vrot.lane.b32.xlu0 %v1822, 64
    %v1834 = vpop.permute.xlu0 %1833
    %v1836 = vmul.f32 %v1831, %v1834
    %1838 = vrot.lane.b32.xlu0 %v1836, 64
    %v1839 = vpop.permute.xlu0 %1838
    %v1841 = vadd.f32 %v1752, %v1839
    %v1842 = vtanh.pop %v1841
    %v1843 = vsub.f32 %v1746, %v1842
    %1845 = vrot.lane.b32.xlu0 %v1843, 96
    %v1846 = vpop.permute.xlu0 %1845
    %v1848 = vmul.f32 %v1831, %v1846
    %1850 = vrot.lane.b32.xlu0 %v1848, 32
    %v1851 = vpop.permute.xlu0 %1850
    %v1853 = vadd.f32 %v1842, %v1851
    %1855 = vrot.lane.b32.xlu0 %v1853, 64
    %v1856 = vpop.permute.xlu0 %1855
    %1858 = vst.msk [vmem:[#allocation4 + $0xe] sm:$0x3] %vm143, %v1856
    %s1859 = scalar_lea.vmem [#allocation6], 2
    %1860 = vst.msk [vmem:[%s1859] sm:$0x3] %vm143, %v1856
    // Predicated region
    $region22: #{seq2seq_encoder_forward.1} parent=1 // pred_check
      _
    $region23: #{seq2seq_encoder_forward.1} parent=1 // pred_check_branch
      %1862 = sbr.rel (0) target = $region25
    $region24: #{seq2seq_encoder_forward.1} parent=1 // pred_region
      %s1864 = ssub.s32 256, 256
      %1865 = vsyncadd [#allocation5], %s1864
      %s1866 = sshll.u32 [#allocation4], 4
      %s1867 = int_to_ptr.vmem [resolvable:$true] %s1866
      %1872 = dma.vmem_to_hbm [thread:$0]  %s1867, 256, %s5, [#allocation5], 128, 128, 8
    $region25: #{seq2seq_encoder_forward.1} parent=1 // pred_fallthru
      _
    // Predicated region
    $region26: #{seq2seq_encoder_forward.1} parent=1 // pred_check
      _
    $region27: #{seq2seq_encoder_forward.1} parent=1 // pred_check_branch
      %1874 = sbr.rel (0) target = $region29
    $region28: #{seq2seq_encoder_forward.1} parent=1 // pred_region
      %s1876 = ssub.s32 64, 64
      %1877 = vsyncadd [#allocation7], %s1876
      %s1878 = sshll.u32 [#allocation6], 4
      %s1879 = int_to_ptr.vmem [resolvable:$true] %s1878
      %1884 = dma.vmem_to_hbm [thread:$0]  %s1879, 64, %s6, [#allocation7], 32, 32, 2
    $region29: #{seq2seq_encoder_forward.1} parent=1 // pred_fallthru
      _
    // Predicated region
    $region30: #{seq2seq_encoder_forward.1} parent=1 // pred_check
      _
    $region31: #{seq2seq_encoder_forward.1} parent=1 // pred_check_branch
      %1886 = sbr.rel (0) target = $region33
    $region32: #{seq2seq_encoder_forward.1} parent=1 // pred_region
      %1887 = dma.done [#allocation5], 256
    $region33: #{seq2seq_encoder_forward.1} parent=1 // pred_fallthru
      _
    // Predicated region
    $region34: #{seq2seq_encoder_forward.1} parent=1 // pred_check
      _
    $region35: #{seq2seq_encoder_forward.1} parent=1 // pred_check_branch
      %1889 = sbr.rel (0) target = $region37
    $region36: #{seq2seq_encoder_forward.1} parent=1 // pred_region
      %1890 = dma.done [#allocation7], 64
    $region37: #{seq2seq_encoder_forward.1} parent=1 // pred_fallthru
      _
    %1891 = vsyncpa [#allocation5], 1
    %1892 = vsyncpa [#allocation7], 1

</llo_original>
